<compile_context>
chip_gen: v5e
topology: v5e:2x2
jax: 0.10.0
libtpu: 0.0.40
codegen_flags: <defaults>
</compile_context>

<pallas_src>
import jax
import jax.numpy as jnp
from jax.experimental import pallas as pl
from jax.experimental.pallas import tpu as pltpu

NHEADS = 9
H1, H2 = 84, 42  # hidden sizes from the module definition


def actor_kernel(x_ref,
                 w1_ref, b1_ref, w2_ref, b2_ref, w3_ref, b3_ref,
                 hw1_ref, hb1_ref, hw2_ref, hb2_ref, hw3_ref, hb3_ref,
                 out_ref):
    """Whole-problem-in-VMEM forward pass.

    x: (B, state_dim) bf16.  Trunk weights (in, out) bf16.  Head weights
    stacked (9, in, out) bf16, head biases (9, 1, out) bf16.  All matmuls
    accumulate in f32 on the MXU via preferred_element_type.
    """

    def dense(v, w_ref, b_ref):
        return (jnp.dot(v, w_ref[...], preferred_element_type=jnp.float32)
                + b_ref[...])

    def bdense(v, w_ref, b_ref):  # batched over the leading head axis
        return (jnp.einsum('hbi,hio->hbo', v, w_ref[...],
                           preferred_element_type=jnp.float32)
                + b_ref[...])

    x = x_ref[...]  # bf16

    # Shared trunk: 3 x (Linear + ReLU); re-cast activations to bf16 so the
    # next MXU pass stays a single bf16 pass.
    h = jnp.maximum(dense(x, w1_ref, b1_ref), 0.0).astype(jnp.bfloat16)
    h = jnp.maximum(dense(h, w2_ref, b2_ref), 0.0).astype(jnp.bfloat16)
    h = jnp.maximum(dense(h, w3_ref, b3_ref), 0.0).astype(jnp.bfloat16)

    # 9 heads as 3 batched matmuls on a head-major (9, B, .) layout
    # (no block-diagonal zero padding, no per-head Python loop of matmuls).
    hb = jnp.broadcast_to(h[None], (NHEADS,) + h.shape)                 # (9,B,42)
    y = jnp.maximum(bdense(hb, hw1_ref, hb1_ref), 0.0).astype(jnp.bfloat16)  # (9,B,84)
    y = jnp.maximum(bdense(y, hw2_ref, hb2_ref), 0.0).astype(jnp.bfloat16)   # (9,B,42)
    logits = bdense(y, hw3_ref, hb3_ref)                                # (9,B,A) f32

    # Per-head softmax == one segmented pass over the last (action) axis.
    m = jnp.max(logits, axis=-1, keepdims=True)
    e = jnp.exp(logits - m)
    denom = jnp.sum(e, axis=-1, keepdims=True)
    out_ref[...] = (e / denom).astype(out_ref.dtype)  # exact division


def actor_forward(x, packed):
    """x: (B, state_dim) float32, packed: dict from pack_params (bf16).

    Returns a tuple of NHEADS arrays of shape (B, action_dim), float32.
    """
    B = x.shape[0]
    action_dim = packed["hw3"].shape[-1]

    # Pad batch to a multiple of 8 (sublane tile); padded rows are dropped.
    Bp = ((B + 7) // 8) * 8
    if Bp != B:
        x = jnp.pad(x, ((0, Bp - B), (0, 0)))
    x = x.astype(jnp.bfloat16)

    vmem = pl.BlockSpec(memory_space=pltpu.MemorySpace.VMEM)
    n_inputs = 13

    # TODO(synk): this actor is usually called repeatedly with tiny batches in
    # an RL rollout loop; the biggest remaining win is amortization — batch
    # many states into one call, or keep the (now ~0.15 MB bf16) weights
    # VMEM-resident across calls.  If B ever grows into the hundreds on v7x,
    # add a 1-D batch grid (weights' index_map pinned to block 0) with
    # dimension_semantics=("parallel",) so both TensorCores participate.
    out = pl.pallas_call(
        actor_kernel,
        out_shape=jax.ShapeDtypeStruct((NHEADS, Bp, action_dim), jnp.float32),
        in_specs=[vmem] * n_inputs,
        out_specs=vmem,
    )(x,
      packed["w1"], packed["b1"], packed["w2"], packed["b2"],
      packed["w3"], packed["b3"],
      packed["hw1"], packed["hb1"], packed["hw2"], packed["hb2"],
      packed["hw3"], packed["hb3"])

    return tuple(out[k, :B, :] for k in range(NHEADS))


def init_params(key, state_dim, action_dim):
    """Deterministic synthetic parameters (PyTorch nn.Linear-style uniform)."""
    keys = iter(jax.random.split(key, 64))

    def lin(in_f, out_f):
        bound = 1.0 / jnp.sqrt(jnp.float32(in_f))
        w = jax.random.uniform(next(keys), (in_f, out_f), jnp.float32,
                               -bound, bound)
        b = jax.random.uniform(next(keys), (1, out_f), jnp.float32,
                               -bound, bound)
        return w, b

    p = {}
    p["w1"], p["b1"] = lin(state_dim, H1)
    p["w2"], p["b2"] = lin(H1, H2)
    p["w3"], p["b3"] = lin(H2, H2)

    hw1, hb1, hw2, hb2, hw3, hb3 = [], [], [], [], [], []
    for _ in range(NHEADS):
        w, b = lin(H2, H1); hw1.append(w); hb1.append(b)
        w, b = lin(H1, H2); hw2.append(w); hb2.append(b)
        w, b = lin(H2, action_dim); hw3.append(w); hb3.append(b)
    p["hw1"] = jnp.stack(hw1); p["hb1"] = jnp.stack(hb1)   # (9, 42, 84)/(9, 1, 84)
    p["hw2"] = jnp.stack(hw2); p["hb2"] = jnp.stack(hb2)   # (9, 84, 42)/(9, 1, 42)
    p["hw3"] = jnp.stack(hw3); p["hb3"] = jnp.stack(hb3)   # (9, 42, A)/(9, 1, A)
    return p


def pack_params(p):
    """Host-side, done once: cast everything to bf16.  Head weights stay
    stacked (9, in, out) — no block-diagonal zero inflation."""
    return {k: v.astype(jnp.bfloat16) for k, v in p.items()}


def actor_reference_f32(x, p):
    """Pure-JAX f32 reference matching the PyTorch forward exactly."""
    h = jax.nn.relu(x @ p["w1"] + p["b1"])
    h = jax.nn.relu(h @ p["w2"] + p["b2"])
    h = jax.nn.relu(h @ p["w3"] + p["b3"])
    outs = []
    for k in range(NHEADS):
        y = jax.nn.relu(h @ p["hw1"][k] + p["hb1"][k])
        y = jax.nn.relu(y @ p["hw2"][k] + p["hb2"][k])
        outs.append(jax.nn.softmax(y @ p["hw3"][k] + p["hb3"][k], axis=-1))
    return tuple(outs)


def actor_reference_bf16(x, p):
    """Pure-JAX reference with the same bf16-weights / f32-accumulation
    precision recipe as the kernel (for a tight numerical check)."""
    bf = jnp.bfloat16

    def dense(v, w, b):
        return (jnp.dot(v.astype(bf), w.astype(bf),
                        preferred_element_type=jnp.float32) + b.astype(bf))

    h = jax.nn.relu(dense(x, p["w1"], p["b1"]))
    h = jax.nn.relu(dense(h, p["w2"], p["b2"]))
    h = jax.nn.relu(dense(h, p["w3"], p["b3"]))
    outs = []
    for k in range(NHEADS):
        y = jax.nn.relu(dense(h, p["hw1"][k], p["hb1"][k]))
        y = jax.nn.relu(dense(y, p["hw2"][k], p["hb2"][k]))
        outs.append(jax.nn.softmax(dense(y, p["hw3"][k], p["hb3"][k]), axis=-1))
    return tuple(outs)


if __name__ == "__main__":
    # Small, module-consistent shapes: 10-site env -> modest state/action dims.
    batch = 4
    state_dim = 30
    action_dim = 16   # env.ANNum + env.CNNum (synthetic)

    key = jax.random.PRNGKey(0)
    k_params, k_x = jax.random.split(key)
    params = init_params(k_params, state_dim, action_dim)
    packed = pack_params(params)
    x = jax.random.normal(k_x, (batch, state_dim), jnp.float32)

    outs = jax.block_until_ready(actor_forward(x, packed))
    refs_bf16 = actor_reference_bf16(x, params)
    refs_f32 = actor_reference_f32(x, params)

    for o, rb, rf in zip(outs, refs_bf16, refs_f32):
        assert o.shape == (batch, action_dim)
        # Exact-division softmax: rows sum to 1 to f32 precision.
        if not jnp.allclose(jnp.sum(o, axis=-1), 1.0, atol=1e-4):
            raise AssertionError("softmax rows do not sum to 1")
        # Tight check vs. a reference using the identical precision recipe.
        if not jnp.allclose(o, rb, atol=2e-3, rtol=2e-3):
            raise AssertionError("mismatch vs bf16-matched reference")
        # Loose sanity check vs. the full-f32 PyTorch-equivalent reference
        # (only difference is the bf16 weight/activation rounding).
        if float(jnp.max(jnp.abs(o - rf))) > 0.1:
            raise AssertionError("bf16 precision loss too large vs f32 reference")

    print("KERNEL_OK")
</pallas_src>

<mosaic_0001>
module attributes {stable_mosaic.version = 11 : i64} {
  func.func @actor_kernel(%arg0: memref<8x30xbf16, #tpu.memory_space<vmem>>, %arg1: memref<30x84xbf16, #tpu.memory_space<vmem>>, %arg2: memref<1x84xbf16, #tpu.memory_space<vmem>>, %arg3: memref<84x42xbf16, #tpu.memory_space<vmem>>, %arg4: memref<1x42xbf16, #tpu.memory_space<vmem>>, %arg5: memref<42x42xbf16, #tpu.memory_space<vmem>>, %arg6: memref<1x42xbf16, #tpu.memory_space<vmem>>, %arg7: memref<9x42x84xbf16, #tpu.memory_space<vmem>>, %arg8: memref<9x1x84xbf16, #tpu.memory_space<vmem>>, %arg9: memref<9x84x42xbf16, #tpu.memory_space<vmem>>, %arg10: memref<9x1x42xbf16, #tpu.memory_space<vmem>>, %arg11: memref<9x42x16xbf16, #tpu.memory_space<vmem>>, %arg12: memref<9x1x16xbf16, #tpu.memory_space<vmem>>, %arg13: memref<9x8x16xf32, #tpu.memory_space<vmem>>) attributes {dimension_semantics = [], scalar_prefetch = 0 : i64, scratch_operands = 0 : i64, tpu.core_type = #tpu.core_type<tc>} {
    %c0 = arith.constant 0 : index
    %c0_0 = arith.constant 0 : index
    %0 = vector.load %arg0[%c0, %c0_0] : memref<8x30xbf16, #tpu.memory_space<vmem>>, vector<8x30xbf16>
    %c0_1 = arith.constant 0 : index
    %c0_2 = arith.constant 0 : index
    %1 = vector.load %arg1[%c0_1, %c0_2] : memref<30x84xbf16, #tpu.memory_space<vmem>>, vector<30x84xbf16>
    %cst = arith.constant dense<0.000000e+00> : vector<8x84xf32>
    %2 = tpu.matmul %0, %1, %cst {dimension_numbers = #tpu.dot_dimension_numbers<[1], [0], [0], [1], [0, 0, 1, 1], [], []>} : vector<8x30xbf16>, vector<30x84xbf16>, vector<8x84xf32> -> vector<8x84xf32>
    %c0_3 = arith.constant 0 : index
    %c0_4 = arith.constant 0 : index
    %3 = vector.load %arg2[%c0_3, %c0_4] : memref<1x84xbf16, #tpu.memory_space<vmem>>, vector<1x84xbf16>
    %4 = arith.extf %3 : vector<1x84xbf16> to vector<1x84xf32>
    %5 = vector.broadcast %4 : vector<1x84xf32> to vector<8x84xf32>
    %6 = arith.addf %2, %5 : vector<8x84xf32>
    %cst_5 = arith.constant 0.000000e+00 : f32
    %7 = vector.broadcast %cst_5 : f32 to vector<8x84xf32>
    %8 = arith.maximumf %6, %7 : vector<8x84xf32>
    %9 = arith.truncf %8 : vector<8x84xf32> to vector<8x84xbf16>
    %c0_6 = arith.constant 0 : index
    %c0_7 = arith.constant 0 : index
    %10 = vector.load %arg3[%c0_6, %c0_7] : memref<84x42xbf16, #tpu.memory_space<vmem>>, vector<84x42xbf16>
    %cst_8 = arith.constant dense<0.000000e+00> : vector<8x42xf32>
    %11 = tpu.matmul %9, %10, %cst_8 {dimension_numbers = #tpu.dot_dimension_numbers<[1], [0], [0], [1], [0, 0, 1, 1], [], []>} : vector<8x84xbf16>, vector<84x42xbf16>, vector<8x42xf32> -> vector<8x42xf32>
    %c0_9 = arith.constant 0 : index
    %c0_10 = arith.constant 0 : index
    %12 = vector.load %arg4[%c0_9, %c0_10] : memref<1x42xbf16, #tpu.memory_space<vmem>>, vector<1x42xbf16>
    %13 = arith.extf %12 : vector<1x42xbf16> to vector<1x42xf32>
    %14 = vector.broadcast %13 : vector<1x42xf32> to vector<8x42xf32>
    %15 = arith.addf %11, %14 : vector<8x42xf32>
    %cst_11 = arith.constant 0.000000e+00 : f32
    %16 = vector.broadcast %cst_11 : f32 to vector<8x42xf32>
    %17 = arith.maximumf %15, %16 : vector<8x42xf32>
    %18 = arith.truncf %17 : vector<8x42xf32> to vector<8x42xbf16>
    %c0_12 = arith.constant 0 : index
    %c0_13 = arith.constant 0 : index
    %19 = vector.load %arg5[%c0_12, %c0_13] : memref<42x42xbf16, #tpu.memory_space<vmem>>, vector<42x42xbf16>
    %cst_14 = arith.constant dense<0.000000e+00> : vector<8x42xf32>
    %20 = tpu.matmul %18, %19, %cst_14 {dimension_numbers = #tpu.dot_dimension_numbers<[1], [0], [0], [1], [0, 0, 1, 1], [], []>} : vector<8x42xbf16>, vector<42x42xbf16>, vector<8x42xf32> -> vector<8x42xf32>
    %c0_15 = arith.constant 0 : index
    %c0_16 = arith.constant 0 : index
    %21 = vector.load %arg6[%c0_15, %c0_16] : memref<1x42xbf16, #tpu.memory_space<vmem>>, vector<1x42xbf16>
    %22 = arith.extf %21 : vector<1x42xbf16> to vector<1x42xf32>
    %23 = vector.broadcast %22 : vector<1x42xf32> to vector<8x42xf32>
    %24 = arith.addf %20, %23 : vector<8x42xf32>
    %cst_17 = arith.constant 0.000000e+00 : f32
    %25 = vector.broadcast %cst_17 : f32 to vector<8x42xf32>
    %26 = arith.maximumf %24, %25 : vector<8x42xf32>
    %27 = arith.truncf %26 : vector<8x42xf32> to vector<8x42xbf16>
    %28 = vector.shape_cast %27 : vector<8x42xbf16> to vector<1x8x42xbf16>
    %29 = vector.shape_cast %28 : vector<1x8x42xbf16> to vector<1x8x42xbf16>
    %30 = vector.broadcast %29 : vector<1x8x42xbf16> to vector<9x8x42xbf16>
    %c0_18 = arith.constant 0 : index
    %c0_19 = arith.constant 0 : index
    %c0_20 = arith.constant 0 : index
    %31 = vector.load %arg7[%c0_18, %c0_19, %c0_20] : memref<9x42x84xbf16, #tpu.memory_space<vmem>>, vector<9x42x84xbf16>
    "tpu.trace_start"() <{level = 10 : i32, message = "hbi,hio->hbo"}> : () -> ()
    %cst_21 = arith.constant dense<0.000000e+00> : vector<9x8x84xf32>
    %32 = tpu.matmul %30, %31, %cst_21 {dimension_numbers = #tpu.dot_dimension_numbers<[2], [1], [1], [2], [0, 0, 0, 1, 1, 2], [0], [0]>} : vector<9x8x42xbf16>, vector<9x42x84xbf16>, vector<9x8x84xf32> -> vector<9x8x84xf32>
    "tpu.trace_stop"() : () -> ()
    %c0_22 = arith.constant 0 : index
    %c0_23 = arith.constant 0 : index
    %c0_24 = arith.constant 0 : index
    %33 = vector.load %arg8[%c0_22, %c0_23, %c0_24] : memref<9x1x84xbf16, #tpu.memory_space<vmem>>, vector<9x1x84xbf16>
    %34 = arith.extf %33 : vector<9x1x84xbf16> to vector<9x1x84xf32>
    %35 = vector.broadcast %34 : vector<9x1x84xf32> to vector<9x8x84xf32>
    %36 = arith.addf %32, %35 : vector<9x8x84xf32>
    %cst_25 = arith.constant 0.000000e+00 : f32
    %37 = vector.broadcast %cst_25 : f32 to vector<9x8x84xf32>
    %38 = arith.maximumf %36, %37 : vector<9x8x84xf32>
    %39 = arith.truncf %38 : vector<9x8x84xf32> to vector<9x8x84xbf16>
    %c0_26 = arith.constant 0 : index
    %c0_27 = arith.constant 0 : index
    %c0_28 = arith.constant 0 : index
    %40 = vector.load %arg9[%c0_26, %c0_27, %c0_28] : memref<9x84x42xbf16, #tpu.memory_space<vmem>>, vector<9x84x42xbf16>
    "tpu.trace_start"() <{level = 10 : i32, message = "hbi,hio->hbo"}> : () -> ()
    %cst_29 = arith.constant dense<0.000000e+00> : vector<9x8x42xf32>
    %41 = tpu.matmul %39, %40, %cst_29 {dimension_numbers = #tpu.dot_dimension_numbers<[2], [1], [1], [2], [0, 0, 0, 1, 1, 2], [0], [0]>} : vector<9x8x84xbf16>, vector<9x84x42xbf16>, vector<9x8x42xf32> -> vector<9x8x42xf32>
    "tpu.trace_stop"() : () -> ()
    %c0_30 = arith.constant 0 : index
    %c0_31 = arith.constant 0 : index
    %c0_32 = arith.constant 0 : index
    %42 = vector.load %arg10[%c0_30, %c0_31, %c0_32] : memref<9x1x42xbf16, #tpu.memory_space<vmem>>, vector<9x1x42xbf16>
    %43 = arith.extf %42 : vector<9x1x42xbf16> to vector<9x1x42xf32>
    %44 = vector.broadcast %43 : vector<9x1x42xf32> to vector<9x8x42xf32>
    %45 = arith.addf %41, %44 : vector<9x8x42xf32>
    %cst_33 = arith.constant 0.000000e+00 : f32
    %46 = vector.broadcast %cst_33 : f32 to vector<9x8x42xf32>
    %47 = arith.maximumf %45, %46 : vector<9x8x42xf32>
    %48 = arith.truncf %47 : vector<9x8x42xf32> to vector<9x8x42xbf16>
    %c0_34 = arith.constant 0 : index
    %c0_35 = arith.constant 0 : index
    %c0_36 = arith.constant 0 : index
    %49 = vector.load %arg11[%c0_34, %c0_35, %c0_36] : memref<9x42x16xbf16, #tpu.memory_space<vmem>>, vector<9x42x16xbf16>
    "tpu.trace_start"() <{level = 10 : i32, message = "hbi,hio->hbo"}> : () -> ()
    %cst_37 = arith.constant dense<0.000000e+00> : vector<9x8x16xf32>
    %50 = tpu.matmul %48, %49, %cst_37 {dimension_numbers = #tpu.dot_dimension_numbers<[2], [1], [1], [2], [0, 0, 0, 1, 1, 2], [0], [0]>} : vector<9x8x42xbf16>, vector<9x42x16xbf16>, vector<9x8x16xf32> -> vector<9x8x16xf32>
    "tpu.trace_stop"() : () -> ()
    %c0_38 = arith.constant 0 : index
    %c0_39 = arith.constant 0 : index
    %c0_40 = arith.constant 0 : index
    %51 = vector.load %arg12[%c0_38, %c0_39, %c0_40] : memref<9x1x16xbf16, #tpu.memory_space<vmem>>, vector<9x1x16xbf16>
    %52 = arith.extf %51 : vector<9x1x16xbf16> to vector<9x1x16xf32>
    %53 = vector.broadcast %52 : vector<9x1x16xf32> to vector<9x8x16xf32>
    %54 = arith.addf %50, %53 : vector<9x8x16xf32>
    %cst_41 = arith.constant dense<0xFF800000> : vector<9x8xf32>
    %55 = vector.multi_reduction <maximumf>, %54, %cst_41 [2] : vector<9x8x16xf32> to vector<9x8xf32>
    %56 = vector.shape_cast %55 : vector<9x8xf32> to vector<9x8x1xf32>
    %57 = vector.broadcast %56 : vector<9x8x1xf32> to vector<9x8x16xf32>
    %58 = arith.subf %54, %57 : vector<9x8x16xf32>
    %59 = math.exp %58 : vector<9x8x16xf32>
    %cst_42 = arith.constant dense<0.000000e+00> : vector<9x8xf32>
    %60 = vector.multi_reduction <add>, %59, %cst_42 [2] : vector<9x8x16xf32> to vector<9x8xf32>
    %61 = vector.shape_cast %60 : vector<9x8xf32> to vector<9x8x1xf32>
    %62 = vector.broadcast %61 : vector<9x8x1xf32> to vector<9x8x16xf32>
    %63 = arith.divf %59, %62 : vector<9x8x16xf32>
    %c0_43 = arith.constant 0 : index
    %c0_44 = arith.constant 0 : index
    %c0_45 = arith.constant 0 : index
    %64 = vector.load %arg13[%c0_43, %c0_44, %c0_45] : memref<9x8x16xf32, #tpu.memory_space<vmem>>, vector<9x8x16xf32>
    tpu.vector_store %arg13[%c0_43, %c0_44, %c0_45], %63 {strides = array<i32>} : memref<9x8x16xf32, #tpu.memory_space<vmem>>, vector<9x8x16xf32>,
    return
  }
}

</mosaic_0001>

<llo_original>
// kernel: tpu_custom_call.1
$region0: #{tpu_custom_call.1}
  #allocation0 [shape = 'u32[]', space=smem, size = 0x4, offset = 0x4, fixed_abs, tag = 'smem constant byte address 0x4 - core index']
  #allocation1 [shape = 'u32[72,128]{1,0:T(1,128)}', space=vmem, size = 0x9000, scoped, tag = 'internal scratch']
  %s0 = inlined_call_operand.vmem [shape: bf16[8,30], index: 0, kind: input, shape index: {}]
  %s1 = inlined_call_operand.vmem [shape: bf16[30,84], index: 1, kind: input, shape index: {}]
  %s2 = inlined_call_operand.vmem [shape: bf16[1,84], index: 2, kind: input, shape index: {}]
  %s3 = inlined_call_operand.vmem [shape: bf16[84,42], index: 3, kind: input, shape index: {}]
  %s4 = inlined_call_operand.vmem [shape: bf16[1,42], index: 4, kind: input, shape index: {}]
  %s5 = inlined_call_operand.vmem [shape: bf16[42,42], index: 5, kind: input, shape index: {}]
  %s6 = inlined_call_operand.vmem [shape: bf16[1,42], index: 6, kind: input, shape index: {}]
  %s7 = inlined_call_operand.vmem [shape: bf16[9,42,84], index: 7, kind: input, shape index: {}]
  %s8 = inlined_call_operand.vmem [shape: bf16[9,1,84], index: 8, kind: input, shape index: {}]
  %s9 = inlined_call_operand.vmem [shape: bf16[9,84,42], index: 9, kind: input, shape index: {}]
  %s10 = inlined_call_operand.vmem [shape: bf16[9,1,42], index: 10, kind: input, shape index: {}]
  %s11 = inlined_call_operand.vmem [shape: bf16[9,42,16], index: 11, kind: input, shape index: {}]
  %s12 = inlined_call_operand.vmem [shape: bf16[9,1,16], index: 12, kind: input, shape index: {}]
  %s13 = inlined_call_operand.hbm [shape: f32[9,8,16], index: 13, kind: output, shape index: {}]
  %s14 = sld [smem:[#allocation0]]
  $region62: #{tpu_custom_call.1} parent=0
    _
  %s16 = ssub.s32 1, %s14
  %s17 = scalar_select 0, %s16, %s14
  $region1: #{tpu_custom_call.1} parent=0
    #allocation2 [shape = 'u8[36864]{0}', space=vmem, size = 0x9000, scoped, tag = 'output window, operand 0, single buffered']
    #allocation3 [shape = 's32[1]{0}', space=sflag, size = 0x4, scoped, tag = 'scoped memory for tpu_custom_call.1']
    %18 = vsyncpa [#allocation3], 0
    // Predicated region
    $region2: #{tpu_custom_call.1} parent=1 // pred_check
      _
    $region3: #{tpu_custom_call.1} parent=1 // pred_check_branch
      %20 = sbr.rel (0) target = $region5
    $region4: #{tpu_custom_call.1} parent=1 // pred_region
      _
    $region5: #{tpu_custom_call.1} parent=1 // pred_fallthru
      _
    // Predicated region
    $region6: #{tpu_custom_call.1} parent=1 // pred_check
      _
    $region7: #{tpu_custom_call.1} parent=1 // pred_check_branch
      %22 = sbr.rel (0) target = $region9
    $region8: #{tpu_custom_call.1} parent=1 // pred_region
      _
    $region9: #{tpu_custom_call.1} parent=1 // pred_fallthru
      _
    // Predicated region
    $region10: #{tpu_custom_call.1} parent=1 // pred_check
      _
    $region11: #{tpu_custom_call.1} parent=1 // pred_check_branch
      %24 = sbr.rel (0) target = $region13
    $region12: #{tpu_custom_call.1} parent=1 // pred_region
      _
    $region13: #{tpu_custom_call.1} parent=1 // pred_fallthru
      _
    // Predicated region
    $region14: #{tpu_custom_call.1} parent=1 // pred_check
      _
    $region15: #{tpu_custom_call.1} parent=1 // pred_check_branch
      %26 = sbr.rel (0) target = $region17
    $region16: #{tpu_custom_call.1} parent=1 // pred_region
      _
    $region17: #{tpu_custom_call.1} parent=1 // pred_fallthru
      _
    // Predicated region
    $region18: #{tpu_custom_call.1} parent=1 // pred_check
      _
    $region19: #{tpu_custom_call.1} parent=1 // pred_check_branch
      %28 = sbr.rel (0) target = $region21
    $region20: #{tpu_custom_call.1} parent=1 // pred_region
      _
    $region21: #{tpu_custom_call.1} parent=1 // pred_fallthru
      _
    // Predicated region
    $region22: #{tpu_custom_call.1} parent=1 // pred_check
      _
    $region23: #{tpu_custom_call.1} parent=1 // pred_check_branch
      %30 = sbr.rel (0) target = $region25
    $region24: #{tpu_custom_call.1} parent=1 // pred_region
      _
    $region25: #{tpu_custom_call.1} parent=1 // pred_fallthru
      _
    // Predicated region
    $region26: #{tpu_custom_call.1} parent=1 // pred_check
      _
    $region27: #{tpu_custom_call.1} parent=1 // pred_check_branch
      %32 = sbr.rel (0) target = $region29
    $region28: #{tpu_custom_call.1} parent=1 // pred_region
      _
    $region29: #{tpu_custom_call.1} parent=1 // pred_fallthru
      _
    // Predicated region
    $region30: #{tpu_custom_call.1} parent=1 // pred_check
      _
    $region31: #{tpu_custom_call.1} parent=1 // pred_check_branch
      %34 = sbr.rel (0) target = $region33
    $region32: #{tpu_custom_call.1} parent=1 // pred_region
      _
    $region33: #{tpu_custom_call.1} parent=1 // pred_fallthru
      _
    // Predicated region
    $region34: #{tpu_custom_call.1} parent=1 // pred_check
      _
    $region35: #{tpu_custom_call.1} parent=1 // pred_check_branch
      %36 = sbr.rel (0) target = $region37
    $region36: #{tpu_custom_call.1} parent=1 // pred_region
      _
    $region37: #{tpu_custom_call.1} parent=1 // pred_fallthru
      _
    // Predicated region
    $region38: #{tpu_custom_call.1} parent=1 // pred_check
      _
    $region39: #{tpu_custom_call.1} parent=1 // pred_check_branch
      %38 = sbr.rel (0) target = $region41
    $region40: #{tpu_custom_call.1} parent=1 // pred_region
      _
    $region41: #{tpu_custom_call.1} parent=1 // pred_fallthru
      _
    // Predicated region
    $region42: #{tpu_custom_call.1} parent=1 // pred_check
      _
    $region43: #{tpu_custom_call.1} parent=1 // pred_check_branch
      %40 = sbr.rel (0) target = $region45
    $region44: #{tpu_custom_call.1} parent=1 // pred_region
      _
    $region45: #{tpu_custom_call.1} parent=1 // pred_fallthru
      _
    // Predicated region
    $region46: #{tpu_custom_call.1} parent=1 // pred_check
      _
    $region47: #{tpu_custom_call.1} parent=1 // pred_check_branch
      %42 = sbr.rel (0) target = $region49
    $region48: #{tpu_custom_call.1} parent=1 // pred_region
      _
    $region49: #{tpu_custom_call.1} parent=1 // pred_fallthru
      _
    // Predicated region
    $region50: #{tpu_custom_call.1} parent=1 // pred_check
      _
    $region51: #{tpu_custom_call.1} parent=1 // pred_check_branch
      %44 = sbr.rel (0) target = $region53
    $region52: #{tpu_custom_call.1} parent=1 // pred_region
      _
    $region53: #{tpu_custom_call.1} parent=1 // pred_fallthru
      _
    %v46 = vld [vmem:[%s0] sm:$0xf]
    %v47 = vld [vmem:[%s1] sm:$0xf]
    %v48 = vld [vmem:[%s1 + $0x4] sm:$0xf]
    %v49 = vld [vmem:[%s1 + $0x8] sm:$0xf]
    %v50 = vld [vmem:[%s1 + $0xc] sm:$0x7]
    %v51 = vld [vmem:[%s2] sm:$0x1]
    %v52 = vunpack.c.l.bf16 %v51
    %v53 = vperm.slane %v52, 0
    %v58 = vunpack.c.l.b16 %v47
    %v59 = vunpack.c.l.b16 %v48
    %v60 = vunpack.c.l.b16 %v49
    %v61 = vunpack.c.l.b16 %v50
    %v62 = vpack.c.b16 %v59, %v58
    %v63 = vpack.c.b16 %v61, %v60
    %vm65 = vcmask 244736
    %v67 = vsel %vm65, %v46, 0
    %vm69 = vcmask 1046528
    %v71 = vsel %vm69, %v63, 0
    %73 = vmatpush.bf16.msra.mxu0 0
    %74 = vmatpush.bf16.msra.mxu0 0
    %75 = vmatpush.bf16.msra.mxu0 0
    %76 = vmatpush.bf16.msra.mxu0 0
    %77 = vmatpush.bf16.msra.mxu0 0
    %78 = vmatpush.bf16.msra.mxu0 0
    %79 = vmatpush.bf16.msra.mxu0 %v71
    %80 = vmatpush.bf16.msra.mxu0 %v62
    %81 = vmatmul.bf16.gmra.mxu0 %v67
    %v82 = vpop.f32.mrf.mxu0
    %v83 = vadd.f32 %v53, %v82
    %v84 = vpop.f32.mrf.mxu0
    %85 = vdwg.mxu0
    %v86 = vmax.f32 %v83, 0.0
    %v87 = vpack.c.bf16 %v86, %v86
    %v88 = vld [vmem:[%s3] sm:$0xf]
    %v89 = vld [vmem:[%s3 + $0x4] sm:$0xf]
    %v90 = vld [vmem:[%s3 + $0x8] sm:$0xf]
    %v91 = vld [vmem:[%s3 + $0xc] sm:$0xf]
    %v92 = vld [vmem:[%s3 + $0x10] sm:$0xf]
    %v93 = vld [vmem:[%s3 + $0x14] sm:$0xf]
    %v94 = vld [vmem:[%s3 + $0x18] sm:$0xf]
    %v95 = vld [vmem:[%s3 + $0x1c] sm:$0xf]
    %v96 = vld [vmem:[%s3 + $0x20] sm:$0xf]
    %v97 = vld [vmem:[%s3 + $0x24] sm:$0xf]
    %v98 = vld [vmem:[%s3 + $0x28] sm:$0x3]
    %v99 = vld [vmem:[%s4] sm:$0x1]
    %v100 = vunpack.c.l.bf16 %v99
    %v101 = vperm.slane %v100, 0
    %v113 = vunpack.c.l.b16 %v88
    %v114 = vunpack.c.l.b16 %v89
    %v115 = vunpack.c.l.b16 %v90
    %v116 = vunpack.c.l.b16 %v91
    %v117 = vunpack.c.l.b16 %v92
    %v118 = vunpack.c.l.b16 %v93
    %v119 = vunpack.c.l.b16 %v94
    %v120 = vunpack.c.l.b16 %v95
    %v121 = vunpack.c.l.b16 %v96
    %v122 = vunpack.c.l.b16 %v97
    %v123 = vunpack.c.l.b16 %v98
    %v124 = vpack.c.b16 %v114, %v113
    %v125 = vpack.c.b16 %v116, %v115
    %v126 = vpack.c.b16 %v118, %v117
    %v127 = vpack.c.b16 %v120, %v119
    %v128 = vpack.c.b16 %v122, %v121
    %v129 = vpack.c.b16 %v123, %v123
    %vm135 = vcmask 687104
    %v137 = vsel %vm135, %v87, 0
    %vm139 = vcmask 1041408
    %v141 = vsel %vm139, %v129, 0
    %143 = vmatpush.bf16.msra.mxu0 0
    %144 = vmatpush.bf16.msra.mxu0 0
    %145 = vmatpush.bf16.msra.mxu0 %v141
    %146 = vmatpush.bf16.msra.mxu0 %v128
    %147 = vmatpush.bf16.msra.mxu0 %v127
    %148 = vmatpush.bf16.msra.mxu0 %v126
    %149 = vmatpush.bf16.msra.mxu0 %v125
    %150 = vmatpush.bf16.msra.mxu0 %v124
    %151 = vmatmul.bf16.gmra.mxu0 %v137
    %v152 = vpop.f32.mrf.mxu0
    %v153 = vadd.f32 %v101, %v152
    %v154 = vpop.f32.mrf.mxu0
    %155 = vdwg.mxu0
    %v156 = vmax.f32 %v153, 0.0
    %v157 = vpack.c.bf16 %v156, %v156
    %v158 = vld [vmem:[%s5] sm:$0xf]
    %v159 = vld [vmem:[%s5 + $0x4] sm:$0xf]
    %v160 = vld [vmem:[%s5 + $0x8] sm:$0xf]
    %v161 = vld [vmem:[%s5 + $0xc] sm:$0xf]
    %v162 = vld [vmem:[%s5 + $0x10] sm:$0xf]
    %v163 = vld [vmem:[%s5 + $0x14] sm:$0x1]
    %v164 = vld [vmem:[%s6] sm:$0x1]
    %v165 = vunpack.c.l.bf16 %v164
    %v166 = vperm.slane %v165, 0
    %v173 = vunpack.c.l.b16 %v158
    %v174 = vunpack.c.l.b16 %v159
    %v175 = vunpack.c.l.b16 %v160
    %v176 = vunpack.c.l.b16 %v161
    %v177 = vunpack.c.l.b16 %v162
    %v178 = vunpack.c.l.b16 %v163
    %v179 = vpack.c.b16 %v174, %v173
    %v180 = vpack.c.b16 %v176, %v175
    %v181 = vpack.c.b16 %v178, %v177
    %vm184 = vcmask 343040
    %v186 = vsel %vm184, %v157, 0
    %vm188 = vcmask 1044480
    %v190 = vsel %vm188, %v181, 0
    %192 = vmatpush.bf16.msra.mxu0 0
    %193 = vmatpush.bf16.msra.mxu0 0
    %194 = vmatpush.bf16.msra.mxu0 0
    %195 = vmatpush.bf16.msra.mxu0 0
    %196 = vmatpush.bf16.msra.mxu0 0
    %197 = vmatpush.bf16.msra.mxu0 %v190
    %198 = vmatpush.bf16.msra.mxu0 %v180
    %199 = vmatpush.bf16.msra.mxu0 %v179
    %200 = vmatmul.bf16.gmra.mxu0 %v186
    %v201 = vpop.f32.mrf.mxu0
    %v202 = vadd.f32 %v166, %v201
    %v203 = vpop.f32.mrf.mxu0
    %204 = vdwg.mxu0
    %v205 = vmax.f32 %v202, 0.0
    %v206 = vpack.c.bf16 %v205, %v205
    %v207 = vld [vmem:[%s7] sm:$0xf]
    %v208 = vld [vmem:[%s7 + $0x4] sm:$0xf]
    %v209 = vld [vmem:[%s7 + $0x8] sm:$0xf]
    %v210 = vld [vmem:[%s7 + $0xc] sm:$0xf]
    %v211 = vld [vmem:[%s7 + $0x10] sm:$0xf]
    %v212 = vld [vmem:[%s7 + $0x14] sm:$0x1]
    %v213 = vld [vmem:[%s7 + $0x18] sm:$0xf]
    %v214 = vld [vmem:[%s7 + $0x1c] sm:$0xf]
    %v215 = vld [vmem:[%s7 + $0x20] sm:$0xf]
    %v216 = vld [vmem:[%s7 + $0x24] sm:$0xf]
    %v217 = vld [vmem:[%s7 + $0x28] sm:$0xf]
    %v218 = vld [vmem:[%s7 + $0x2c] sm:$0x1]
    %v219 = vld [vmem:[%s7 + $0x30] sm:$0xf]
    %v220 = vld [vmem:[%s7 + $0x34] sm:$0xf]
    %v221 = vld [vmem:[%s7 + $0x38] sm:$0xf]
    %v222 = vld [vmem:[%s7 + $0x3c] sm:$0xf]
    %v223 = vld [vmem:[%s7 + $0x40] sm:$0xf]
    %v224 = vld [vmem:[%s7 + $0x44] sm:$0x1]
    %v225 = vld [vmem:[%s7 + $0x48] sm:$0xf]
    %v226 = vld [vmem:[%s7 + $0x4c] sm:$0xf]
    %v227 = vld [vmem:[%s7 + $0x50] sm:$0xf]
    %v228 = vld [vmem:[%s7 + $0x54] sm:$0xf]
    %v229 = vld [vmem:[%s7 + $0x58] sm:$0xf]
    %v230 = vld [vmem:[%s7 + $0x5c] sm:$0x1]
    %v231 = vld [vmem:[%s7 + $0x60] sm:$0xf]
    %v232 = vld [vmem:[%s7 + $0x64] sm:$0xf]
    %v233 = vld [vmem:[%s7 + $0x68] sm:$0xf]
    %v234 = vld [vmem:[%s7 + $0x6c] sm:$0xf]
    %v235 = vld [vmem:[%s7 + $0x70] sm:$0xf]
    %v236 = vld [vmem:[%s7 + $0x74] sm:$0x1]
    %v237 = vld [vmem:[%s7 + $0x78] sm:$0xf]
    %v238 = vld [vmem:[%s7 + $0x7c] sm:$0xf]
    %v239 = vld [vmem:[%s7 + $0x80] sm:$0xf]
    %v240 = vld [vmem:[%s7 + $0x84] sm:$0xf]
    %v241 = vld [vmem:[%s7 + $0x88] sm:$0xf]
    %v242 = vld [vmem:[%s7 + $0x8c] sm:$0x1]
    %v243 = vld [vmem:[%s7 + $0x90] sm:$0xf]
    %v244 = vld [vmem:[%s7 + $0x94] sm:$0xf]
    %v245 = vld [vmem:[%s7 + $0x98] sm:$0xf]
    %v246 = vld [vmem:[%s7 + $0x9c] sm:$0xf]
    %v247 = vld [vmem:[%s7 + $0xa0] sm:$0xf]
    %v248 = vld [vmem:[%s7 + $0xa4] sm:$0x1]
    %v249 = vld [vmem:[%s7 + $0xa8] sm:$0xf]
    %v250 = vld [vmem:[%s7 + $0xac] sm:$0xf]
    %v251 = vld [vmem:[%s7 + $0xb0] sm:$0xf]
    %v252 = vld [vmem:[%s7 + $0xb4] sm:$0xf]
    %v253 = vld [vmem:[%s7 + $0xb8] sm:$0xf]
    %v254 = vld [vmem:[%s7 + $0xbc] sm:$0x1]
    %v255 = vld [vmem:[%s7 + $0xc0] sm:$0xf]
    %v256 = vld [vmem:[%s7 + $0xc4] sm:$0xf]
    %v257 = vld [vmem:[%s7 + $0xc8] sm:$0xf]
    %v258 = vld [vmem:[%s7 + $0xcc] sm:$0xf]
    %v259 = vld [vmem:[%s7 + $0xd0] sm:$0xf]
    %v260 = vld [vmem:[%s7 + $0xd4] sm:$0x1]
    %v261 = vld [vmem:[%s8] sm:$0x1]
    %v262 = vld [vmem:[%s8 + $0x1] sm:$0x1]
    %v263 = vld [vmem:[%s8 + $0x2] sm:$0x1]
    %v264 = vld [vmem:[%s8 + $0x3] sm:$0x1]
    %v265 = vld [vmem:[%s8 + $0x4] sm:$0x1]
    %v266 = vld [vmem:[%s8 + $0x5] sm:$0x1]
    %v267 = vld [vmem:[%s8 + $0x6] sm:$0x1]
    %v268 = vld [vmem:[%s8 + $0x7] sm:$0x1]
    %v269 = vld [vmem:[%s8 + $0x8] sm:$0x1]
    %v270 = vunpack.c.l.bf16 %v261
    %v271 = vunpack.c.l.bf16 %v262
    %v272 = vunpack.c.l.bf16 %v263
    %v273 = vunpack.c.l.bf16 %v264
    %v274 = vunpack.c.l.bf16 %v265
    %v275 = vunpack.c.l.bf16 %v266
    %v276 = vunpack.c.l.bf16 %v267
    %v277 = vunpack.c.l.bf16 %v268
    %v278 = vunpack.c.l.bf16 %v269
    %v279 = vperm.slane %v270, 0
    %v280 = vperm.slane %v271, 0
    %v281 = vperm.slane %v272, 0
    %v282 = vperm.slane %v273, 0
    %v283 = vperm.slane %v274, 0
    %v284 = vperm.slane %v275, 0
    %v285 = vperm.slane %v276, 0
    %v286 = vperm.slane %v277, 0
    %v287 = vperm.slane %v278, 0
    %v294 = vunpack.c.l.b16 %v207
    %v295 = vunpack.c.l.b16 %v208
    %v296 = vunpack.c.l.b16 %v209
    %v297 = vunpack.c.l.b16 %v210
    %v298 = vunpack.c.l.b16 %v211
    %v299 = vunpack.c.l.b16 %v212
    %v300 = vpack.c.b16 %v295, %v294
    %v301 = vpack.c.b16 %v297, %v296
    %v302 = vpack.c.b16 %v299, %v298
    %v306 = vsel %vm184, %v206, 0
    %v309 = vsel %vm188, %v302, 0
    %311 = vmatpush.bf16.msra.mxu0 0
    %312 = vmatpush.bf16.msra.mxu0 0
    %313 = vmatpush.bf16.msra.mxu0 0
    %314 = vmatpush.bf16.msra.mxu0 0
    %315 = vmatpush.bf16.msra.mxu0 0
    %316 = vmatpush.bf16.msra.mxu0 %v309
    %317 = vmatpush.bf16.msra.mxu0 %v301
    %318 = vmatpush.bf16.msra.mxu0 %v300
    %319 = vmatmul.bf16.gmra.mxu0 %v306
    %v320 = vpop.f32.mrf.mxu0
    %v321 = vadd.f32 %v279, %v320
    %v322 = vpop.f32.mrf.mxu0
    %323 = vdwg.mxu0
    %v330 = vunpack.c.l.b16 %v213
    %v331 = vunpack.c.l.b16 %v214
    %v332 = vunpack.c.l.b16 %v215
    %v333 = vunpack.c.l.b16 %v216
    %v334 = vunpack.c.l.b16 %v217
    %v335 = vunpack.c.l.b16 %v218
    %v336 = vpack.c.b16 %v331, %v330
    %v337 = vpack.c.b16 %v333, %v332
    %v338 = vpack.c.b16 %v335, %v334
    %v342 = vsel %vm188, %v338, 0
    %344 = vmatpush.bf16.msra.mxu0 0
    %345 = vmatpush.bf16.msra.mxu0 0
    %346 = vmatpush.bf16.msra.mxu0 0
    %347 = vmatpush.bf16.msra.mxu0 0
    %348 = vmatpush.bf16.msra.mxu0 0
    %349 = vmatpush.bf16.msra.mxu0 %v342
    %350 = vmatpush.bf16.msra.mxu0 %v337
    %351 = vmatpush.bf16.msra.mxu0 %v336
    %352 = vmatmul.bf16.gmra.mxu0 %v306
    %v353 = vpop.f32.mrf.mxu0
    %v354 = vadd.f32 %v280, %v353
    %v355 = vpop.f32.mrf.mxu0
    %356 = vdwg.mxu0
    %v363 = vunpack.c.l.b16 %v219
    %v364 = vunpack.c.l.b16 %v220
    %v365 = vunpack.c.l.b16 %v221
    %v366 = vunpack.c.l.b16 %v222
    %v367 = vunpack.c.l.b16 %v223
    %v368 = vunpack.c.l.b16 %v224
    %v369 = vpack.c.b16 %v364, %v363
    %v370 = vpack.c.b16 %v366, %v365
    %v371 = vpack.c.b16 %v368, %v367
    %v375 = vsel %vm188, %v371, 0
    %377 = vmatpush.bf16.msra.mxu0 0
    %378 = vmatpush.bf16.msra.mxu0 0
    %379 = vmatpush.bf16.msra.mxu0 0
    %380 = vmatpush.bf16.msra.mxu0 0
    %381 = vmatpush.bf16.msra.mxu0 0
    %382 = vmatpush.bf16.msra.mxu0 %v375
    %383 = vmatpush.bf16.msra.mxu0 %v370
    %384 = vmatpush.bf16.msra.mxu0 %v369
    %385 = vmatmul.bf16.gmra.mxu0 %v306
    %v386 = vpop.f32.mrf.mxu0
    %v387 = vadd.f32 %v281, %v386
    %v388 = vpop.f32.mrf.mxu0
    %389 = vdwg.mxu0
    %v396 = vunpack.c.l.b16 %v225
    %v397 = vunpack.c.l.b16 %v226
    %v398 = vunpack.c.l.b16 %v227
    %v399 = vunpack.c.l.b16 %v228
    %v400 = vunpack.c.l.b16 %v229
    %v401 = vunpack.c.l.b16 %v230
    %v402 = vpack.c.b16 %v397, %v396
    %v403 = vpack.c.b16 %v399, %v398
    %v404 = vpack.c.b16 %v401, %v400
    %v408 = vsel %vm188, %v404, 0
    %410 = vmatpush.bf16.msra.mxu0 0
    %411 = vmatpush.bf16.msra.mxu0 0
    %412 = vmatpush.bf16.msra.mxu0 0
    %413 = vmatpush.bf16.msra.mxu0 0
    %414 = vmatpush.bf16.msra.mxu0 0
    %415 = vmatpush.bf16.msra.mxu0 %v408
    %416 = vmatpush.bf16.msra.mxu0 %v403
    %417 = vmatpush.bf16.msra.mxu0 %v402
    %418 = vmatmul.bf16.gmra.mxu0 %v306
    %v419 = vpop.f32.mrf.mxu0
    %v420 = vadd.f32 %v282, %v419
    %v421 = vpop.f32.mrf.mxu0
    %422 = vdwg.mxu0
    %v429 = vunpack.c.l.b16 %v231
    %v430 = vunpack.c.l.b16 %v232
    %v431 = vunpack.c.l.b16 %v233
    %v432 = vunpack.c.l.b16 %v234
    %v433 = vunpack.c.l.b16 %v235
    %v434 = vunpack.c.l.b16 %v236
    %v435 = vpack.c.b16 %v430, %v429
    %v436 = vpack.c.b16 %v432, %v431
    %v437 = vpack.c.b16 %v434, %v433
    %v441 = vsel %vm188, %v437, 0
    %443 = vmatpush.bf16.msra.mxu0 0
    %444 = vmatpush.bf16.msra.mxu0 0
    %445 = vmatpush.bf16.msra.mxu0 0
    %446 = vmatpush.bf16.msra.mxu0 0
    %447 = vmatpush.bf16.msra.mxu0 0
    %448 = vmatpush.bf16.msra.mxu0 %v441
    %449 = vmatpush.bf16.msra.mxu0 %v436
    %450 = vmatpush.bf16.msra.mxu0 %v435
    %451 = vmatmul.bf16.gmra.mxu0 %v306
    %v452 = vpop.f32.mrf.mxu0
    %v453 = vadd.f32 %v283, %v452
    %v454 = vpop.f32.mrf.mxu0
    %455 = vdwg.mxu0
    %v462 = vunpack.c.l.b16 %v237
    %v463 = vunpack.c.l.b16 %v238
    %v464 = vunpack.c.l.b16 %v239
    %v465 = vunpack.c.l.b16 %v240
    %v466 = vunpack.c.l.b16 %v241
    %v467 = vunpack.c.l.b16 %v242
    %v468 = vpack.c.b16 %v463, %v462
    %v469 = vpack.c.b16 %v465, %v464
    %v470 = vpack.c.b16 %v467, %v466
    %v474 = vsel %vm188, %v470, 0
    %476 = vmatpush.bf16.msra.mxu0 0
    %477 = vmatpush.bf16.msra.mxu0 0
    %478 = vmatpush.bf16.msra.mxu0 0
    %479 = vmatpush.bf16.msra.mxu0 0
    %480 = vmatpush.bf16.msra.mxu0 0
    %481 = vmatpush.bf16.msra.mxu0 %v474
    %482 = vmatpush.bf16.msra.mxu0 %v469
    %483 = vmatpush.bf16.msra.mxu0 %v468
    %484 = vmatmul.bf16.gmra.mxu0 %v306
    %v485 = vpop.f32.mrf.mxu0
    %v486 = vadd.f32 %v284, %v485
    %v487 = vpop.f32.mrf.mxu0
    %488 = vdwg.mxu0
    %v495 = vunpack.c.l.b16 %v243
    %v496 = vunpack.c.l.b16 %v244
    %v497 = vunpack.c.l.b16 %v245
    %v498 = vunpack.c.l.b16 %v246
    %v499 = vunpack.c.l.b16 %v247
    %v500 = vunpack.c.l.b16 %v248
    %v501 = vpack.c.b16 %v496, %v495
    %v502 = vpack.c.b16 %v498, %v497
    %v503 = vpack.c.b16 %v500, %v499
    %v507 = vsel %vm188, %v503, 0
    %509 = vmatpush.bf16.msra.mxu0 0
    %510 = vmatpush.bf16.msra.mxu0 0
    %511 = vmatpush.bf16.msra.mxu0 0
    %512 = vmatpush.bf16.msra.mxu0 0
    %513 = vmatpush.bf16.msra.mxu0 0
    %514 = vmatpush.bf16.msra.mxu0 %v507
    %515 = vmatpush.bf16.msra.mxu0 %v502
    %516 = vmatpush.bf16.msra.mxu0 %v501
    %517 = vmatmul.bf16.gmra.mxu0 %v306
    %v518 = vpop.f32.mrf.mxu0
    %v519 = vadd.f32 %v285, %v518
    %v520 = vpop.f32.mrf.mxu0
    %521 = vdwg.mxu0
    %v528 = vunpack.c.l.b16 %v249
    %v529 = vunpack.c.l.b16 %v250
    %v530 = vunpack.c.l.b16 %v251
    %v531 = vunpack.c.l.b16 %v252
    %v532 = vunpack.c.l.b16 %v253
    %v533 = vunpack.c.l.b16 %v254
    %v534 = vpack.c.b16 %v529, %v528
    %v535 = vpack.c.b16 %v531, %v530
    %v536 = vpack.c.b16 %v533, %v532
    %v540 = vsel %vm188, %v536, 0
    %542 = vmatpush.bf16.msra.mxu0 0
    %543 = vmatpush.bf16.msra.mxu0 0
    %544 = vmatpush.bf16.msra.mxu0 0
    %545 = vmatpush.bf16.msra.mxu0 0
    %546 = vmatpush.bf16.msra.mxu0 0
    %547 = vmatpush.bf16.msra.mxu0 %v540
    %548 = vmatpush.bf16.msra.mxu0 %v535
    %549 = vmatpush.bf16.msra.mxu0 %v534
    %550 = vmatmul.bf16.gmra.mxu0 %v306
    %v551 = vpop.f32.mrf.mxu0
    %v552 = vadd.f32 %v286, %v551
    %v553 = vpop.f32.mrf.mxu0
    %554 = vdwg.mxu0
    %v561 = vunpack.c.l.b16 %v255
    %v562 = vunpack.c.l.b16 %v256
    %v563 = vunpack.c.l.b16 %v257
    %v564 = vunpack.c.l.b16 %v258
    %v565 = vunpack.c.l.b16 %v259
    %v566 = vunpack.c.l.b16 %v260
    %v567 = vpack.c.b16 %v562, %v561
    %v568 = vpack.c.b16 %v564, %v563
    %v569 = vpack.c.b16 %v566, %v565
    %v573 = vsel %vm188, %v569, 0
    %575 = vmatpush.bf16.msra.mxu0 0
    %576 = vmatpush.bf16.msra.mxu0 0
    %577 = vmatpush.bf16.msra.mxu0 0
    %578 = vmatpush.bf16.msra.mxu0 0
    %579 = vmatpush.bf16.msra.mxu0 0
    %580 = vmatpush.bf16.msra.mxu0 %v573
    %581 = vmatpush.bf16.msra.mxu0 %v568
    %582 = vmatpush.bf16.msra.mxu0 %v567
    %583 = vmatmul.bf16.gmra.mxu0 %v306
    %v584 = vpop.f32.mrf.mxu0
    %v585 = vadd.f32 %v287, %v584
    %v586 = vpop.f32.mrf.mxu0
    %587 = vdwg.mxu0
    %v588 = vmax.f32 %v321, 0.0
    %v589 = vmax.f32 %v354, 0.0
    %v590 = vmax.f32 %v387, 0.0
    %v591 = vmax.f32 %v420, 0.0
    %v592 = vmax.f32 %v453, 0.0
    %v593 = vmax.f32 %v486, 0.0
    %v594 = vmax.f32 %v519, 0.0
    %v595 = vmax.f32 %v552, 0.0
    %v596 = vmax.f32 %v585, 0.0
    %v597 = vpack.c.bf16 %v588, %v588
    %v598 = vpack.c.bf16 %v589, %v589
    %v599 = vpack.c.bf16 %v590, %v590
    %v600 = vpack.c.bf16 %v591, %v591
    %v601 = vpack.c.bf16 %v592, %v592
    %v602 = vpack.c.bf16 %v593, %v593
    %v603 = vpack.c.bf16 %v594, %v594
    %v604 = vpack.c.bf16 %v595, %v595
    %v605 = vpack.c.bf16 %v596, %v596
    %v606 = vld [vmem:[%s9] sm:$0xf]
    %v607 = vld [vmem:[%s9 + $0x4] sm:$0xf]
    %v608 = vld [vmem:[%s9 + $0x8] sm:$0xf]
    %v609 = vld [vmem:[%s9 + $0xc] sm:$0xf]
    %v610 = vld [vmem:[%s9 + $0x10] sm:$0xf]
    %v611 = vld [vmem:[%s9 + $0x14] sm:$0xf]
    %v612 = vld [vmem:[%s9 + $0x18] sm:$0xf]
    %v613 = vld [vmem:[%s9 + $0x1c] sm:$0xf]
    %v614 = vld [vmem:[%s9 + $0x20] sm:$0xf]
    %v615 = vld [vmem:[%s9 + $0x24] sm:$0xf]
    %v616 = vld [vmem:[%s9 + $0x28] sm:$0x3]
    %v617 = vld [vmem:[%s9 + $0x2c] sm:$0xf]
    %v618 = vld [vmem:[%s9 + $0x30] sm:$0xf]
    %v619 = vld [vmem:[%s9 + $0x34] sm:$0xf]
    %v620 = vld [vmem:[%s9 + $0x38] sm:$0xf]
    %v621 = vld [vmem:[%s9 + $0x3c] sm:$0xf]
    %v622 = vld [vmem:[%s9 + $0x40] sm:$0xf]
    %v623 = vld [vmem:[%s9 + $0x44] sm:$0xf]
    %v624 = vld [vmem:[%s9 + $0x48] sm:$0xf]
    %v625 = vld [vmem:[%s9 + $0x4c] sm:$0xf]
    %v626 = vld [vmem:[%s9 + $0x50] sm:$0xf]
    %v627 = vld [vmem:[%s9 + $0x54] sm:$0x3]
    %v628 = vld [vmem:[%s9 + $0x58] sm:$0xf]
    %v629 = vld [vmem:[%s9 + $0x5c] sm:$0xf]
    %v630 = vld [vmem:[%s9 + $0x60] sm:$0xf]
    %v631 = vld [vmem:[%s9 + $0x64] sm:$0xf]
    %v632 = vld [vmem:[%s9 + $0x68] sm:$0xf]
    %v633 = vld [vmem:[%s9 + $0x6c] sm:$0xf]
    %v634 = vld [vmem:[%s9 + $0x70] sm:$0xf]
    %v635 = vld [vmem:[%s9 + $0x74] sm:$0xf]
    %v636 = vld [vmem:[%s9 + $0x78] sm:$0xf]
    %v637 = vld [vmem:[%s9 + $0x7c] sm:$0xf]
    %v638 = vld [vmem:[%s9 + $0x80] sm:$0x3]
    %v639 = vld [vmem:[%s9 + $0x84] sm:$0xf]
    %v640 = vld [vmem:[%s9 + $0x88] sm:$0xf]
    %v641 = vld [vmem:[%s9 + $0x8c] sm:$0xf]
    %v642 = vld [vmem:[%s9 + $0x90] sm:$0xf]
    %v643 = vld [vmem:[%s9 + $0x94] sm:$0xf]
    %v644 = vld [vmem:[%s9 + $0x98] sm:$0xf]
    %v645 = vld [vmem:[%s9 + $0x9c] sm:$0xf]
    %v646 = vld [vmem:[%s9 + $0xa0] sm:$0xf]
    %v647 = vld [vmem:[%s9 + $0xa4] sm:$0xf]
    %v648 = vld [vmem:[%s9 + $0xa8] sm:$0xf]
    %v649 = vld [vmem:[%s9 + $0xac] sm:$0x3]
    %v650 = vld [vmem:[%s9 + $0xb0] sm:$0xf]
    %v651 = vld [vmem:[%s9 + $0xb4] sm:$0xf]
    %v652 = vld [vmem:[%s9 + $0xb8] sm:$0xf]
    %v653 = vld [vmem:[%s9 + $0xbc] sm:$0xf]
    %v654 = vld [vmem:[%s9 + $0xc0] sm:$0xf]
    %v655 = vld [vmem:[%s9 + $0xc4] sm:$0xf]
    %v656 = vld [vmem:[%s9 + $0xc8] sm:$0xf]
    %v657 = vld [vmem:[%s9 + $0xcc] sm:$0xf]
    %v658 = vld [vmem:[%s9 + $0xd0] sm:$0xf]
    %v659 = vld [vmem:[%s9 + $0xd4] sm:$0xf]
    %v660 = vld [vmem:[%s9 + $0xd8] sm:$0x3]
    %v661 = vld [vmem:[%s9 + $0xdc] sm:$0xf]
    %v662 = vld [vmem:[%s9 + $0xe0] sm:$0xf]
    %v663 = vld [vmem:[%s9 + $0xe4] sm:$0xf]
    %v664 = vld [vmem:[%s9 + $0xe8] sm:$0xf]
    %v665 = vld [vmem:[%s9 + $0xec] sm:$0xf]
    %v666 = vld [vmem:[%s9 + $0xf0] sm:$0xf]
    %v667 = vld [vmem:[%s9 + $0xf4] sm:$0xf]
    %v668 = vld [vmem:[%s9 + $0xf8] sm:$0xf]
    %v669 = vld [vmem:[%s9 + $0xfc] sm:$0xf]
    %v670 = vld [vmem:[%s9 + $0x100] sm:$0xf]
    %v671 = vld [vmem:[%s9 + $0x104] sm:$0x3]
    %v672 = vld [vmem:[%s9 + $0x108] sm:$0xf]
    %v673 = vld [vmem:[%s9 + $0x10c] sm:$0xf]
    %v674 = vld [vmem:[%s9 + $0x110] sm:$0xf]
    %v675 = vld [vmem:[%s9 + $0x114] sm:$0xf]
    %v676 = vld [vmem:[%s9 + $0x118] sm:$0xf]
    %v677 = vld [vmem:[%s9 + $0x11c] sm:$0xf]
    %v678 = vld [vmem:[%s9 + $0x120] sm:$0xf]
    %v679 = vld [vmem:[%s9 + $0x124] sm:$0xf]
    %v680 = vld [vmem:[%s9 + $0x128] sm:$0xf]
    %v681 = vld [vmem:[%s9 + $0x12c] sm:$0xf]
    %v682 = vld [vmem:[%s9 + $0x130] sm:$0x3]
    %v683 = vld [vmem:[%s9 + $0x134] sm:$0xf]
    %v684 = vld [vmem:[%s9 + $0x138] sm:$0xf]
    %v685 = vld [vmem:[%s9 + $0x13c] sm:$0xf]
    %v686 = vld [vmem:[%s9 + $0x140] sm:$0xf]
    %v687 = vld [vmem:[%s9 + $0x144] sm:$0xf]
    %v688 = vld [vmem:[%s9 + $0x148] sm:$0xf]
    %v689 = vld [vmem:[%s9 + $0x14c] sm:$0xf]
    %v690 = vld [vmem:[%s9 + $0x150] sm:$0xf]
    %v691 = vld [vmem:[%s9 + $0x154] sm:$0xf]
    %v692 = vld [vmem:[%s9 + $0x158] sm:$0xf]
    %v693 = vld [vmem:[%s9 + $0x15c] sm:$0x3]
    %v694 = vld [vmem:[%s9 + $0x160] sm:$0xf]
    %v695 = vld [vmem:[%s9 + $0x164] sm:$0xf]
    %v696 = vld [vmem:[%s9 + $0x168] sm:$0xf]
    %v697 = vld [vmem:[%s9 + $0x16c] sm:$0xf]
    %v698 = vld [vmem:[%s9 + $0x170] sm:$0xf]
    %v699 = vld [vmem:[%s9 + $0x174] sm:$0xf]
    %v700 = vld [vmem:[%s9 + $0x178] sm:$0xf]
    %v701 = vld [vmem:[%s9 + $0x17c] sm:$0xf]
    %v702 = vld [vmem:[%s9 + $0x180] sm:$0xf]
    %v703 = vld [vmem:[%s9 + $0x184] sm:$0xf]
    %v704 = vld [vmem:[%s9 + $0x188] sm:$0x3]
    %v705 = vld [vmem:[%s10] sm:$0x1]
    %v706 = vld [vmem:[%s10 + $0x1] sm:$0x1]
    %v707 = vld [vmem:[%s10 + $0x2] sm:$0x1]
    %v708 = vld [vmem:[%s10 + $0x3] sm:$0x1]
    %v709 = vld [vmem:[%s10 + $0x4] sm:$0x1]
    %v710 = vld [vmem:[%s10 + $0x5] sm:$0x1]
    %v711 = vld [vmem:[%s10 + $0x6] sm:$0x1]
    %v712 = vld [vmem:[%s10 + $0x7] sm:$0x1]
    %v713 = vld [vmem:[%s10 + $0x8] sm:$0x1]
    %v714 = vunpack.c.l.bf16 %v705
    %v715 = vunpack.c.l.bf16 %v706
    %v716 = vunpack.c.l.bf16 %v707
    %v717 = vunpack.c.l.bf16 %v708
    %v718 = vunpack.c.l.bf16 %v709
    %v719 = vunpack.c.l.bf16 %v710
    %v720 = vunpack.c.l.bf16 %v711
    %v721 = vunpack.c.l.bf16 %v712
    %v722 = vunpack.c.l.bf16 %v713
    %v723 = vperm.slane %v714, 0
    %v724 = vperm.slane %v715, 0
    %v725 = vperm.slane %v716, 0
    %v726 = vperm.slane %v717, 0
    %v727 = vperm.slane %v718, 0
    %v728 = vperm.slane %v719, 0
    %v729 = vperm.slane %v720, 0
    %v730 = vperm.slane %v721, 0
    %v731 = vperm.slane %v722, 0
    %v743 = vunpack.c.l.b16 %v606
    %v744 = vunpack.c.l.b16 %v607
    %v745 = vunpack.c.l.b16 %v608
    %v746 = vunpack.c.l.b16 %v609
    %v747 = vunpack.c.l.b16 %v610
    %v748 = vunpack.c.l.b16 %v611
    %v749 = vunpack.c.l.b16 %v612
    %v750 = vunpack.c.l.b16 %v613
    %v751 = vunpack.c.l.b16 %v614
    %v752 = vunpack.c.l.b16 %v615
    %v753 = vunpack.c.l.b16 %v616
    %v754 = vpack.c.b16 %v744, %v743
    %v755 = vpack.c.b16 %v746, %v745
    %v756 = vpack.c.b16 %v748, %v747
    %v757 = vpack.c.b16 %v750, %v749
    %v758 = vpack.c.b16 %v752, %v751
    %v759 = vpack.c.b16 %v753, %v753
    %v766 = vsel %vm135, %v597, 0
    %v769 = vsel %vm139, %v759, 0
    %771 = vmatpush.bf16.msra.mxu0 0
    %772 = vmatpush.bf16.msra.mxu0 0
    %773 = vmatpush.bf16.msra.mxu0 %v769
    %774 = vmatpush.bf16.msra.mxu0 %v758
    %775 = vmatpush.bf16.msra.mxu0 %v757
    %776 = vmatpush.bf16.msra.mxu0 %v756
    %777 = vmatpush.bf16.msra.mxu0 %v755
    %778 = vmatpush.bf16.msra.mxu0 %v754
    %779 = vmatmul.bf16.gmra.mxu0 %v766
    %v780 = vpop.f32.mrf.mxu0
    %v781 = vadd.f32 %v723, %v780
    %v782 = vpop.f32.mrf.mxu0
    %783 = vdwg.mxu0
    %v795 = vunpack.c.l.b16 %v617
    %v796 = vunpack.c.l.b16 %v618
    %v797 = vunpack.c.l.b16 %v619
    %v798 = vunpack.c.l.b16 %v620
    %v799 = vunpack.c.l.b16 %v621
    %v800 = vunpack.c.l.b16 %v622
    %v801 = vunpack.c.l.b16 %v623
    %v802 = vunpack.c.l.b16 %v624
    %v803 = vunpack.c.l.b16 %v625
    %v804 = vunpack.c.l.b16 %v626
    %v805 = vunpack.c.l.b16 %v627
    %v806 = vpack.c.b16 %v796, %v795
    %v807 = vpack.c.b16 %v798, %v797
    %v808 = vpack.c.b16 %v800, %v799
    %v809 = vpack.c.b16 %v802, %v801
    %v810 = vpack.c.b16 %v804, %v803
    %v811 = vpack.c.b16 %v805, %v805
    %v818 = vsel %vm135, %v598, 0
    %v821 = vsel %vm139, %v811, 0
    %823 = vmatpush.bf16.msra.mxu0 0
    %824 = vmatpush.bf16.msra.mxu0 0
    %825 = vmatpush.bf16.msra.mxu0 %v821
    %826 = vmatpush.bf16.msra.mxu0 %v810
    %827 = vmatpush.bf16.msra.mxu0 %v809
    %828 = vmatpush.bf16.msra.mxu0 %v808
    %829 = vmatpush.bf16.msra.mxu0 %v807
    %830 = vmatpush.bf16.msra.mxu0 %v806
    %831 = vmatmul.bf16.gmra.mxu0 %v818
    %v832 = vpop.f32.mrf.mxu0
    %v833 = vadd.f32 %v724, %v832
    %v834 = vpop.f32.mrf.mxu0
    %835 = vdwg.mxu0
    %v847 = vunpack.c.l.b16 %v628
    %v848 = vunpack.c.l.b16 %v629
    %v849 = vunpack.c.l.b16 %v630
    %v850 = vunpack.c.l.b16 %v631
    %v851 = vunpack.c.l.b16 %v632
    %v852 = vunpack.c.l.b16 %v633
    %v853 = vunpack.c.l.b16 %v634
    %v854 = vunpack.c.l.b16 %v635
    %v855 = vunpack.c.l.b16 %v636
    %v856 = vunpack.c.l.b16 %v637
    %v857 = vunpack.c.l.b16 %v638
    %v858 = vpack.c.b16 %v848, %v847
    %v859 = vpack.c.b16 %v850, %v849
    %v860 = vpack.c.b16 %v852, %v851
    %v861 = vpack.c.b16 %v854, %v853
    %v862 = vpack.c.b16 %v856, %v855
    %v863 = vpack.c.b16 %v857, %v857
    %v870 = vsel %vm135, %v599, 0
    %v873 = vsel %vm139, %v863, 0
    %875 = vmatpush.bf16.msra.mxu0 0
    %876 = vmatpush.bf16.msra.mxu0 0
    %877 = vmatpush.bf16.msra.mxu0 %v873
    %878 = vmatpush.bf16.msra.mxu0 %v862
    %879 = vmatpush.bf16.msra.mxu0 %v861
    %880 = vmatpush.bf16.msra.mxu0 %v860
    %881 = vmatpush.bf16.msra.mxu0 %v859
    %882 = vmatpush.bf16.msra.mxu0 %v858
    %883 = vmatmul.bf16.gmra.mxu0 %v870
    %v884 = vpop.f32.mrf.mxu0
    %v885 = vadd.f32 %v725, %v884
    %v886 = vpop.f32.mrf.mxu0
    %887 = vdwg.mxu0
    %v899 = vunpack.c.l.b16 %v639
    %v900 = vunpack.c.l.b16 %v640
    %v901 = vunpack.c.l.b16 %v641
    %v902 = vunpack.c.l.b16 %v642
    %v903 = vunpack.c.l.b16 %v643
    %v904 = vunpack.c.l.b16 %v644
    %v905 = vunpack.c.l.b16 %v645
    %v906 = vunpack.c.l.b16 %v646
    %v907 = vunpack.c.l.b16 %v647
    %v908 = vunpack.c.l.b16 %v648
    %v909 = vunpack.c.l.b16 %v649
    %v910 = vpack.c.b16 %v900, %v899
    %v911 = vpack.c.b16 %v902, %v901
    %v912 = vpack.c.b16 %v904, %v903
    %v913 = vpack.c.b16 %v906, %v905
    %v914 = vpack.c.b16 %v908, %v907
    %v915 = vpack.c.b16 %v909, %v909
    %v922 = vsel %vm135, %v600, 0
    %v925 = vsel %vm139, %v915, 0
    %927 = vmatpush.bf16.msra.mxu0 0
    %928 = vmatpush.bf16.msra.mxu0 0
    %929 = vmatpush.bf16.msra.mxu0 %v925
    %930 = vmatpush.bf16.msra.mxu0 %v914
    %931 = vmatpush.bf16.msra.mxu0 %v913
    %932 = vmatpush.bf16.msra.mxu0 %v912
    %933 = vmatpush.bf16.msra.mxu0 %v911
    %934 = vmatpush.bf16.msra.mxu0 %v910
    %935 = vmatmul.bf16.gmra.mxu0 %v922
    %v936 = vpop.f32.mrf.mxu0
    %v937 = vadd.f32 %v726, %v936
    %v938 = vpop.f32.mrf.mxu0
    %939 = vdwg.mxu0
    %v951 = vunpack.c.l.b16 %v650
    %v952 = vunpack.c.l.b16 %v651
    %v953 = vunpack.c.l.b16 %v652
    %v954 = vunpack.c.l.b16 %v653
    %v955 = vunpack.c.l.b16 %v654
    %v956 = vunpack.c.l.b16 %v655
    %v957 = vunpack.c.l.b16 %v656
    %v958 = vunpack.c.l.b16 %v657
    %v959 = vunpack.c.l.b16 %v658
    %v960 = vunpack.c.l.b16 %v659
    %v961 = vunpack.c.l.b16 %v660
    %v962 = vpack.c.b16 %v952, %v951
    %v963 = vpack.c.b16 %v954, %v953
    %v964 = vpack.c.b16 %v956, %v955
    %v965 = vpack.c.b16 %v958, %v957
    %v966 = vpack.c.b16 %v960, %v959
    %v967 = vpack.c.b16 %v961, %v961
    %v974 = vsel %vm135, %v601, 0
    %v977 = vsel %vm139, %v967, 0
    %979 = vmatpush.bf16.msra.mxu0 0
    %980 = vmatpush.bf16.msra.mxu0 0
    %981 = vmatpush.bf16.msra.mxu0 %v977
    %982 = vmatpush.bf16.msra.mxu0 %v966
    %983 = vmatpush.bf16.msra.mxu0 %v965
    %984 = vmatpush.bf16.msra.mxu0 %v964
    %985 = vmatpush.bf16.msra.mxu0 %v963
    %986 = vmatpush.bf16.msra.mxu0 %v962
    %987 = vmatmul.bf16.gmra.mxu0 %v974
    %v988 = vpop.f32.mrf.mxu0
    %v989 = vadd.f32 %v727, %v988
    %v990 = vpop.f32.mrf.mxu0
    %991 = vdwg.mxu0
    %v1003 = vunpack.c.l.b16 %v661
    %v1004 = vunpack.c.l.b16 %v662
    %v1005 = vunpack.c.l.b16 %v663
    %v1006 = vunpack.c.l.b16 %v664
    %v1007 = vunpack.c.l.b16 %v665
    %v1008 = vunpack.c.l.b16 %v666
    %v1009 = vunpack.c.l.b16 %v667
    %v1010 = vunpack.c.l.b16 %v668
    %v1011 = vunpack.c.l.b16 %v669
    %v1012 = vunpack.c.l.b16 %v670
    %v1013 = vunpack.c.l.b16 %v671
    %v1014 = vpack.c.b16 %v1004, %v1003
    %v1015 = vpack.c.b16 %v1006, %v1005
    %v1016 = vpack.c.b16 %v1008, %v1007
    %v1017 = vpack.c.b16 %v1010, %v1009
    %v1018 = vpack.c.b16 %v1012, %v1011
    %v1019 = vpack.c.b16 %v1013, %v1013
    %v1026 = vsel %vm135, %v602, 0
    %v1029 = vsel %vm139, %v1019, 0
    %1031 = vmatpush.bf16.msra.mxu0 0
    %1032 = vmatpush.bf16.msra.mxu0 0
    %1033 = vmatpush.bf16.msra.mxu0 %v1029
    %1034 = vmatpush.bf16.msra.mxu0 %v1018
    %1035 = vmatpush.bf16.msra.mxu0 %v1017
    %1036 = vmatpush.bf16.msra.mxu0 %v1016
    %1037 = vmatpush.bf16.msra.mxu0 %v1015
    %1038 = vmatpush.bf16.msra.mxu0 %v1014
    %1039 = vmatmul.bf16.gmra.mxu0 %v1026
    %v1040 = vpop.f32.mrf.mxu0
    %v1041 = vadd.f32 %v728, %v1040
    %v1042 = vpop.f32.mrf.mxu0
    %1043 = vdwg.mxu0
    %v1055 = vunpack.c.l.b16 %v672
    %v1056 = vunpack.c.l.b16 %v673
    %v1057 = vunpack.c.l.b16 %v674
    %v1058 = vunpack.c.l.b16 %v675
    %v1059 = vunpack.c.l.b16 %v676
    %v1060 = vunpack.c.l.b16 %v677
    %v1061 = vunpack.c.l.b16 %v678
    %v1062 = vunpack.c.l.b16 %v679
    %v1063 = vunpack.c.l.b16 %v680
    %v1064 = vunpack.c.l.b16 %v681
    %v1065 = vunpack.c.l.b16 %v682
    %v1066 = vpack.c.b16 %v1056, %v1055
    %v1067 = vpack.c.b16 %v1058, %v1057
    %v1068 = vpack.c.b16 %v1060, %v1059
    %v1069 = vpack.c.b16 %v1062, %v1061
    %v1070 = vpack.c.b16 %v1064, %v1063
    %v1071 = vpack.c.b16 %v1065, %v1065
    %v1078 = vsel %vm135, %v603, 0
    %v1081 = vsel %vm139, %v1071, 0
    %1083 = vmatpush.bf16.msra.mxu0 0
    %1084 = vmatpush.bf16.msra.mxu0 0
    %1085 = vmatpush.bf16.msra.mxu0 %v1081
    %1086 = vmatpush.bf16.msra.mxu0 %v1070
    %1087 = vmatpush.bf16.msra.mxu0 %v1069
    %1088 = vmatpush.bf16.msra.mxu0 %v1068
    %1089 = vmatpush.bf16.msra.mxu0 %v1067
    %1090 = vmatpush.bf16.msra.mxu0 %v1066
    %1091 = vmatmul.bf16.gmra.mxu0 %v1078
    %v1092 = vpop.f32.mrf.mxu0
    %v1093 = vadd.f32 %v729, %v1092
    %v1094 = vpop.f32.mrf.mxu0
    %1095 = vdwg.mxu0
    %v1107 = vunpack.c.l.b16 %v683
    %v1108 = vunpack.c.l.b16 %v684
    %v1109 = vunpack.c.l.b16 %v685
    %v1110 = vunpack.c.l.b16 %v686
    %v1111 = vunpack.c.l.b16 %v687
    %v1112 = vunpack.c.l.b16 %v688
    %v1113 = vunpack.c.l.b16 %v689
    %v1114 = vunpack.c.l.b16 %v690
    %v1115 = vunpack.c.l.b16 %v691
    %v1116 = vunpack.c.l.b16 %v692
    %v1117 = vunpack.c.l.b16 %v693
    %v1118 = vpack.c.b16 %v1108, %v1107
    %v1119 = vpack.c.b16 %v1110, %v1109
    %v1120 = vpack.c.b16 %v1112, %v1111
    %v1121 = vpack.c.b16 %v1114, %v1113
    %v1122 = vpack.c.b16 %v1116, %v1115
    %v1123 = vpack.c.b16 %v1117, %v1117
    %v1130 = vsel %vm135, %v604, 0
    %v1133 = vsel %vm139, %v1123, 0
    %1135 = vmatpush.bf16.msra.mxu0 0
    %1136 = vmatpush.bf16.msra.mxu0 0
    %1137 = vmatpush.bf16.msra.mxu0 %v1133
    %1138 = vmatpush.bf16.msra.mxu0 %v1122
    %1139 = vmatpush.bf16.msra.mxu0 %v1121
    %1140 = vmatpush.bf16.msra.mxu0 %v1120
    %1141 = vmatpush.bf16.msra.mxu0 %v1119
    %1142 = vmatpush.bf16.msra.mxu0 %v1118
    %1143 = vmatmul.bf16.gmra.mxu0 %v1130
    %v1144 = vpop.f32.mrf.mxu0
    %v1145 = vadd.f32 %v730, %v1144
    %v1146 = vpop.f32.mrf.mxu0
    %1147 = vdwg.mxu0
    %v1159 = vunpack.c.l.b16 %v694
    %v1160 = vunpack.c.l.b16 %v695
    %v1161 = vunpack.c.l.b16 %v696
    %v1162 = vunpack.c.l.b16 %v697
    %v1163 = vunpack.c.l.b16 %v698
    %v1164 = vunpack.c.l.b16 %v699
    %v1165 = vunpack.c.l.b16 %v700
    %v1166 = vunpack.c.l.b16 %v701
    %v1167 = vunpack.c.l.b16 %v702
    %v1168 = vunpack.c.l.b16 %v703
    %v1169 = vunpack.c.l.b16 %v704
    %v1170 = vpack.c.b16 %v1160, %v1159
    %v1171 = vpack.c.b16 %v1162, %v1161
    %v1172 = vpack.c.b16 %v1164, %v1163
    %v1173 = vpack.c.b16 %v1166, %v1165
    %v1174 = vpack.c.b16 %v1168, %v1167
    %v1175 = vpack.c.b16 %v1169, %v1169
    %v1182 = vsel %vm135, %v605, 0
    %v1185 = vsel %vm139, %v1175, 0
    %1187 = vmatpush.bf16.msra.mxu0 0
    %1188 = vmatpush.bf16.msra.mxu0 0
    %1189 = vmatpush.bf16.msra.mxu0 %v1185
    %1190 = vmatpush.bf16.msra.mxu0 %v1174
    %1191 = vmatpush.bf16.msra.mxu0 %v1173
    %1192 = vmatpush.bf16.msra.mxu0 %v1172
    %1193 = vmatpush.bf16.msra.mxu0 %v1171
    %1194 = vmatpush.bf16.msra.mxu0 %v1170
    %1195 = vmatmul.bf16.gmra.mxu0 %v1182
    %v1196 = vpop.f32.mrf.mxu0
    %v1197 = vadd.f32 %v731, %v1196
    %v1198 = vpop.f32.mrf.mxu0
    %1199 = vdwg.mxu0
    %v1200 = vmax.f32 %v781, 0.0
    %v1201 = vmax.f32 %v833, 0.0
    %v1202 = vmax.f32 %v885, 0.0
    %v1203 = vmax.f32 %v937, 0.0
    %v1204 = vmax.f32 %v989, 0.0
    %v1205 = vmax.f32 %v1041, 0.0
    %v1206 = vmax.f32 %v1093, 0.0
    %v1207 = vmax.f32 %v1145, 0.0
    %v1208 = vmax.f32 %v1197, 0.0
    %v1209 = vpack.c.bf16 %v1200, %v1200
    %v1210 = vpack.c.bf16 %v1201, %v1201
    %v1211 = vpack.c.bf16 %v1202, %v1202
    %v1212 = vpack.c.bf16 %v1203, %v1203
    %v1213 = vpack.c.bf16 %v1204, %v1204
    %v1214 = vpack.c.bf16 %v1205, %v1205
    %v1215 = vpack.c.bf16 %v1206, %v1206
    %v1216 = vpack.c.bf16 %v1207, %v1207
    %v1217 = vpack.c.bf16 %v1208, %v1208
    %v1218 = vld [vmem:[%s11] sm:$0xf]
    %v1219 = vld [vmem:[%s11 + $0x4] sm:$0xf]
    %v1220 = vld [vmem:[%s11 + $0x8] sm:$0xf]
    %v1221 = vld [vmem:[%s11 + $0xc] sm:$0xf]
    %v1222 = vld [vmem:[%s11 + $0x10] sm:$0xf]
    %v1223 = vld [vmem:[%s11 + $0x14] sm:$0x1]
    %v1224 = vld [vmem:[%s11 + $0x18] sm:$0xf]
    %v1225 = vld [vmem:[%s11 + $0x1c] sm:$0xf]
    %v1226 = vld [vmem:[%s11 + $0x20] sm:$0xf]
    %v1227 = vld [vmem:[%s11 + $0x24] sm:$0xf]
    %v1228 = vld [vmem:[%s11 + $0x28] sm:$0xf]
    %v1229 = vld [vmem:[%s11 + $0x2c] sm:$0x1]
    %v1230 = vld [vmem:[%s11 + $0x30] sm:$0xf]
    %v1231 = vld [vmem:[%s11 + $0x34] sm:$0xf]
    %v1232 = vld [vmem:[%s11 + $0x38] sm:$0xf]
    %v1233 = vld [vmem:[%s11 + $0x3c] sm:$0xf]
    %v1234 = vld [vmem:[%s11 + $0x40] sm:$0xf]
    %v1235 = vld [vmem:[%s11 + $0x44] sm:$0x1]
    %v1236 = vld [vmem:[%s11 + $0x48] sm:$0xf]
    %v1237 = vld [vmem:[%s11 + $0x4c] sm:$0xf]
    %v1238 = vld [vmem:[%s11 + $0x50] sm:$0xf]
    %v1239 = vld [vmem:[%s11 + $0x54] sm:$0xf]
    %v1240 = vld [vmem:[%s11 + $0x58] sm:$0xf]
    %v1241 = vld [vmem:[%s11 + $0x5c] sm:$0x1]
    %v1242 = vld [vmem:[%s11 + $0x60] sm:$0xf]
    %v1243 = vld [vmem:[%s11 + $0x64] sm:$0xf]
    %v1244 = vld [vmem:[%s11 + $0x68] sm:$0xf]
    %v1245 = vld [vmem:[%s11 + $0x6c] sm:$0xf]
    %v1246 = vld [vmem:[%s11 + $0x70] sm:$0xf]
    %v1247 = vld [vmem:[%s11 + $0x74] sm:$0x1]
    %v1248 = vld [vmem:[%s11 + $0x78] sm:$0xf]
    %v1249 = vld [vmem:[%s11 + $0x7c] sm:$0xf]
    %v1250 = vld [vmem:[%s11 + $0x80] sm:$0xf]
    %v1251 = vld [vmem:[%s11 + $0x84] sm:$0xf]
    %v1252 = vld [vmem:[%s11 + $0x88] sm:$0xf]
    %v1253 = vld [vmem:[%s11 + $0x8c] sm:$0x1]
    %v1254 = vld [vmem:[%s11 + $0x90] sm:$0xf]
    %v1255 = vld [vmem:[%s11 + $0x94] sm:$0xf]
    %v1256 = vld [vmem:[%s11 + $0x98] sm:$0xf]
    %v1257 = vld [vmem:[%s11 + $0x9c] sm:$0xf]
    %v1258 = vld [vmem:[%s11 + $0xa0] sm:$0xf]
    %v1259 = vld [vmem:[%s11 + $0xa4] sm:$0x1]
    %v1260 = vld [vmem:[%s11 + $0xa8] sm:$0xf]
    %v1261 = vld [vmem:[%s11 + $0xac] sm:$0xf]
    %v1262 = vld [vmem:[%s11 + $0xb0] sm:$0xf]
    %v1263 = vld [vmem:[%s11 + $0xb4] sm:$0xf]
    %v1264 = vld [vmem:[%s11 + $0xb8] sm:$0xf]
    %v1265 = vld [vmem:[%s11 + $0xbc] sm:$0x1]
    %v1266 = vld [vmem:[%s11 + $0xc0] sm:$0xf]
    %v1267 = vld [vmem:[%s11 + $0xc4] sm:$0xf]
    %v1268 = vld [vmem:[%s11 + $0xc8] sm:$0xf]
    %v1269 = vld [vmem:[%s11 + $0xcc] sm:$0xf]
    %v1270 = vld [vmem:[%s11 + $0xd0] sm:$0xf]
    %v1271 = vld [vmem:[%s11 + $0xd4] sm:$0x1]
    %v1272 = vld [vmem:[%s12] sm:$0x1]
    %v1273 = vld [vmem:[%s12 + $0x1] sm:$0x1]
    %v1274 = vld [vmem:[%s12 + $0x2] sm:$0x1]
    %v1275 = vld [vmem:[%s12 + $0x3] sm:$0x1]
    %v1276 = vld [vmem:[%s12 + $0x4] sm:$0x1]
    %v1277 = vld [vmem:[%s12 + $0x5] sm:$0x1]
    %v1278 = vld [vmem:[%s12 + $0x6] sm:$0x1]
    %v1279 = vld [vmem:[%s12 + $0x7] sm:$0x1]
    %v1280 = vld [vmem:[%s12 + $0x8] sm:$0x1]
    %v1281 = vunpack.c.l.bf16 %v1272
    %v1282 = vunpack.c.l.bf16 %v1273
    %v1283 = vunpack.c.l.bf16 %v1274
    %v1284 = vunpack.c.l.bf16 %v1275
    %v1285 = vunpack.c.l.bf16 %v1276
    %v1286 = vunpack.c.l.bf16 %v1277
    %v1287 = vunpack.c.l.bf16 %v1278
    %v1288 = vunpack.c.l.bf16 %v1279
    %v1289 = vunpack.c.l.bf16 %v1280
    %v1290 = vperm.slane %v1281, 0
    %v1291 = vperm.slane %v1282, 0
    %v1292 = vperm.slane %v1283, 0
    %v1293 = vperm.slane %v1284, 0
    %v1294 = vperm.slane %v1285, 0
    %v1295 = vperm.slane %v1286, 0
    %v1296 = vperm.slane %v1287, 0
    %v1297 = vperm.slane %v1288, 0
    %v1298 = vperm.slane %v1289, 0
    %v1305 = vunpack.c.l.b16 %v1218
    %v1306 = vunpack.c.l.b16 %v1219
    %v1307 = vunpack.c.l.b16 %v1220
    %v1308 = vunpack.c.l.b16 %v1221
    %v1309 = vunpack.c.l.b16 %v1222
    %v1310 = vunpack.c.l.b16 %v1223
    %v1311 = vpack.c.b16 %v1306, %v1305
    %v1312 = vpack.c.b16 %v1308, %v1307
    %v1313 = vpack.c.b16 %v1310, %v1309
    %v1317 = vsel %vm184, %v1209, 0
    %v1320 = vsel %vm188, %v1313, 0
    %1322 = vmatpush.bf16.msra.mxu0 0
    %1323 = vmatpush.bf16.msra.mxu0 0
    %1324 = vmatpush.bf16.msra.mxu0 0
    %1325 = vmatpush.bf16.msra.mxu0 0
    %1326 = vmatpush.bf16.msra.mxu0 0
    %1327 = vmatpush.bf16.msra.mxu0 %v1320
    %1328 = vmatpush.bf16.msra.mxu0 %v1312
    %1329 = vmatpush.bf16.msra.mxu0 %v1311
    %1330 = vmatmul.bf16.gmra.mxu0 %v1317
    %v1331 = vpop.f32.mrf.mxu0
    %v1332 = vadd.f32 %v1290, %v1331
    %v1333 = vpop.f32.mrf.mxu0
    %1334 = vdwg.mxu0
    %v1341 = vunpack.c.l.b16 %v1224
    %v1342 = vunpack.c.l.b16 %v1225
    %v1343 = vunpack.c.l.b16 %v1226
    %v1344 = vunpack.c.l.b16 %v1227
    %v1345 = vunpack.c.l.b16 %v1228
    %v1346 = vunpack.c.l.b16 %v1229
    %v1347 = vpack.c.b16 %v1342, %v1341
    %v1348 = vpack.c.b16 %v1344, %v1343
    %v1349 = vpack.c.b16 %v1346, %v1345
    %v1353 = vsel %vm184, %v1210, 0
    %v1356 = vsel %vm188, %v1349, 0
    %1358 = vmatpush.bf16.msra.mxu0 0
    %1359 = vmatpush.bf16.msra.mxu0 0
    %1360 = vmatpush.bf16.msra.mxu0 0
    %1361 = vmatpush.bf16.msra.mxu0 0
    %1362 = vmatpush.bf16.msra.mxu0 0
    %1363 = vmatpush.bf16.msra.mxu0 %v1356
    %1364 = vmatpush.bf16.msra.mxu0 %v1348
    %1365 = vmatpush.bf16.msra.mxu0 %v1347
    %1366 = vmatmul.bf16.gmra.mxu0 %v1353
    %v1367 = vpop.f32.mrf.mxu0
    %v1368 = vadd.f32 %v1291, %v1367
    %v1369 = vpop.f32.mrf.mxu0
    %1370 = vdwg.mxu0
    %v1377 = vunpack.c.l.b16 %v1230
    %v1378 = vunpack.c.l.b16 %v1231
    %v1379 = vunpack.c.l.b16 %v1232
    %v1380 = vunpack.c.l.b16 %v1233
    %v1381 = vunpack.c.l.b16 %v1234
    %v1382 = vunpack.c.l.b16 %v1235
    %v1383 = vpack.c.b16 %v1378, %v1377
    %v1384 = vpack.c.b16 %v1380, %v1379
    %v1385 = vpack.c.b16 %v1382, %v1381
    %v1389 = vsel %vm184, %v1211, 0
    %v1392 = vsel %vm188, %v1385, 0
    %1394 = vmatpush.bf16.msra.mxu0 0
    %1395 = vmatpush.bf16.msra.mxu0 0
    %1396 = vmatpush.bf16.msra.mxu0 0
    %1397 = vmatpush.bf16.msra.mxu0 0
    %1398 = vmatpush.bf16.msra.mxu0 0
    %1399 = vmatpush.bf16.msra.mxu0 %v1392
    %1400 = vmatpush.bf16.msra.mxu0 %v1384
    %1401 = vmatpush.bf16.msra.mxu0 %v1383
    %1402 = vmatmul.bf16.gmra.mxu0 %v1389
    %v1403 = vpop.f32.mrf.mxu0
    %v1404 = vadd.f32 %v1292, %v1403
    %v1405 = vpop.f32.mrf.mxu0
    %1406 = vdwg.mxu0
    %v1413 = vunpack.c.l.b16 %v1236
    %v1414 = vunpack.c.l.b16 %v1237
    %v1415 = vunpack.c.l.b16 %v1238
    %v1416 = vunpack.c.l.b16 %v1239
    %v1417 = vunpack.c.l.b16 %v1240
    %v1418 = vunpack.c.l.b16 %v1241
    %v1419 = vpack.c.b16 %v1414, %v1413
    %v1420 = vpack.c.b16 %v1416, %v1415
    %v1421 = vpack.c.b16 %v1418, %v1417
    %v1425 = vsel %vm184, %v1212, 0
    %v1428 = vsel %vm188, %v1421, 0
    %1430 = vmatpush.bf16.msra.mxu0 0
    %1431 = vmatpush.bf16.msra.mxu0 0
    %1432 = vmatpush.bf16.msra.mxu0 0
    %1433 = vmatpush.bf16.msra.mxu0 0
    %1434 = vmatpush.bf16.msra.mxu0 0
    %1435 = vmatpush.bf16.msra.mxu0 %v1428
    %1436 = vmatpush.bf16.msra.mxu0 %v1420
    %1437 = vmatpush.bf16.msra.mxu0 %v1419
    %1438 = vmatmul.bf16.gmra.mxu0 %v1425
    %v1439 = vpop.f32.mrf.mxu0
    %v1440 = vadd.f32 %v1293, %v1439
    %v1441 = vpop.f32.mrf.mxu0
    %1442 = vdwg.mxu0
    %v1449 = vunpack.c.l.b16 %v1242
    %v1450 = vunpack.c.l.b16 %v1243
    %v1451 = vunpack.c.l.b16 %v1244
    %v1452 = vunpack.c.l.b16 %v1245
    %v1453 = vunpack.c.l.b16 %v1246
    %v1454 = vunpack.c.l.b16 %v1247
    %v1455 = vpack.c.b16 %v1450, %v1449
    %v1456 = vpack.c.b16 %v1452, %v1451
    %v1457 = vpack.c.b16 %v1454, %v1453
    %v1461 = vsel %vm184, %v1213, 0
    %v1464 = vsel %vm188, %v1457, 0
    %1466 = vmatpush.bf16.msra.mxu0 0
    %1467 = vmatpush.bf16.msra.mxu0 0
    %1468 = vmatpush.bf16.msra.mxu0 0
    %1469 = vmatpush.bf16.msra.mxu0 0
    %1470 = vmatpush.bf16.msra.mxu0 0
    %1471 = vmatpush.bf16.msra.mxu0 %v1464
    %1472 = vmatpush.bf16.msra.mxu0 %v1456
    %1473 = vmatpush.bf16.msra.mxu0 %v1455
    %1474 = vmatmul.bf16.gmra.mxu0 %v1461
    %v1475 = vpop.f32.mrf.mxu0
    %v1476 = vadd.f32 %v1294, %v1475
    %v1477 = vpop.f32.mrf.mxu0
    %1478 = vdwg.mxu0
    %v1485 = vunpack.c.l.b16 %v1248
    %v1486 = vunpack.c.l.b16 %v1249
    %v1487 = vunpack.c.l.b16 %v1250
    %v1488 = vunpack.c.l.b16 %v1251
    %v1489 = vunpack.c.l.b16 %v1252
    %v1490 = vunpack.c.l.b16 %v1253
    %v1491 = vpack.c.b16 %v1486, %v1485
    %v1492 = vpack.c.b16 %v1488, %v1487
    %v1493 = vpack.c.b16 %v1490, %v1489
    %v1497 = vsel %vm184, %v1214, 0
    %v1500 = vsel %vm188, %v1493, 0
    %1502 = vmatpush.bf16.msra.mxu0 0
    %1503 = vmatpush.bf16.msra.mxu0 0
    %1504 = vmatpush.bf16.msra.mxu0 0
    %1505 = vmatpush.bf16.msra.mxu0 0
    %1506 = vmatpush.bf16.msra.mxu0 0
    %1507 = vmatpush.bf16.msra.mxu0 %v1500
    %1508 = vmatpush.bf16.msra.mxu0 %v1492
    %1509 = vmatpush.bf16.msra.mxu0 %v1491
    %1510 = vmatmul.bf16.gmra.mxu0 %v1497
    %v1511 = vpop.f32.mrf.mxu0
    %v1512 = vadd.f32 %v1295, %v1511
    %v1513 = vpop.f32.mrf.mxu0
    %1514 = vdwg.mxu0
    %v1521 = vunpack.c.l.b16 %v1254
    %v1522 = vunpack.c.l.b16 %v1255
    %v1523 = vunpack.c.l.b16 %v1256
    %v1524 = vunpack.c.l.b16 %v1257
    %v1525 = vunpack.c.l.b16 %v1258
    %v1526 = vunpack.c.l.b16 %v1259
    %v1527 = vpack.c.b16 %v1522, %v1521
    %v1528 = vpack.c.b16 %v1524, %v1523
    %v1529 = vpack.c.b16 %v1526, %v1525
    %v1533 = vsel %vm184, %v1215, 0
    %v1536 = vsel %vm188, %v1529, 0
    %1538 = vmatpush.bf16.msra.mxu0 0
    %1539 = vmatpush.bf16.msra.mxu0 0
    %1540 = vmatpush.bf16.msra.mxu0 0
    %1541 = vmatpush.bf16.msra.mxu0 0
    %1542 = vmatpush.bf16.msra.mxu0 0
    %1543 = vmatpush.bf16.msra.mxu0 %v1536
    %1544 = vmatpush.bf16.msra.mxu0 %v1528
    %1545 = vmatpush.bf16.msra.mxu0 %v1527
    %1546 = vmatmul.bf16.gmra.mxu0 %v1533
    %v1547 = vpop.f32.mrf.mxu0
    %v1548 = vadd.f32 %v1296, %v1547
    %v1549 = vpop.f32.mrf.mxu0
    %1550 = vdwg.mxu0
    %v1557 = vunpack.c.l.b16 %v1260
    %v1558 = vunpack.c.l.b16 %v1261
    %v1559 = vunpack.c.l.b16 %v1262
    %v1560 = vunpack.c.l.b16 %v1263
    %v1561 = vunpack.c.l.b16 %v1264
    %v1562 = vunpack.c.l.b16 %v1265
    %v1563 = vpack.c.b16 %v1558, %v1557
    %v1564 = vpack.c.b16 %v1560, %v1559
    %v1565 = vpack.c.b16 %v1562, %v1561
    %v1569 = vsel %vm184, %v1216, 0
    %v1572 = vsel %vm188, %v1565, 0
    %1574 = vmatpush.bf16.msra.mxu0 0
    %1575 = vmatpush.bf16.msra.mxu0 0
    %1576 = vmatpush.bf16.msra.mxu0 0
    %1577 = vmatpush.bf16.msra.mxu0 0
    %1578 = vmatpush.bf16.msra.mxu0 0
    %1579 = vmatpush.bf16.msra.mxu0 %v1572
    %1580 = vmatpush.bf16.msra.mxu0 %v1564
    %1581 = vmatpush.bf16.msra.mxu0 %v1563
    %1582 = vmatmul.bf16.gmra.mxu0 %v1569
    %v1583 = vpop.f32.mrf.mxu0
    %v1584 = vadd.f32 %v1297, %v1583
    %v1585 = vpop.f32.mrf.mxu0
    %1586 = vdwg.mxu0
    %v1593 = vunpack.c.l.b16 %v1266
    %v1594 = vunpack.c.l.b16 %v1267
    %v1595 = vunpack.c.l.b16 %v1268
    %v1596 = vunpack.c.l.b16 %v1269
    %v1597 = vunpack.c.l.b16 %v1270
    %v1598 = vunpack.c.l.b16 %v1271
    %v1599 = vpack.c.b16 %v1594, %v1593
    %v1600 = vpack.c.b16 %v1596, %v1595
    %v1601 = vpack.c.b16 %v1598, %v1597
    %v1605 = vsel %vm184, %v1217, 0
    %v1608 = vsel %vm188, %v1601, 0
    %1610 = vmatpush.bf16.msra.mxu0 0
    %1611 = vmatpush.bf16.msra.mxu0 0
    %1612 = vmatpush.bf16.msra.mxu0 0
    %1613 = vmatpush.bf16.msra.mxu0 0
    %1614 = vmatpush.bf16.msra.mxu0 0
    %1615 = vmatpush.bf16.msra.mxu0 %v1608
    %1616 = vmatpush.bf16.msra.mxu0 %v1600
    %1617 = vmatpush.bf16.msra.mxu0 %v1599
    %1618 = vmatmul.bf16.gmra.mxu0 %v1605
    %v1619 = vpop.f32.mrf.mxu0
    %v1620 = vadd.f32 %v1298, %v1619
    %v1621 = vpop.f32.mrf.mxu0
    %1622 = vdwg.mxu0
    %vm1623 = vcmask 130048
    %v1624 = vsel %vm1623, %v1332, -inf
    %1625 = vmax.xlane.f32.xlu0 %v1624
    %v1626 = vpop.xlane.xlu0 %1625
    %v1627 = vsel %vm1623, %v1368, -inf
    %1628 = vmax.xlane.f32.xlu0 %v1627
    %v1629 = vpop.xlane.xlu0 %1628
    %v1630 = vsel %vm1623, %v1404, -inf
    %1631 = vmax.xlane.f32.xlu0 %v1630
    %v1632 = vpop.xlane.xlu0 %1631
    %v1633 = vsel %vm1623, %v1440, -inf
    %1634 = vmax.xlane.f32.xlu0 %v1633
    %v1635 = vpop.xlane.xlu0 %1634
    %v1636 = vsel %vm1623, %v1476, -inf
    %1637 = vmax.xlane.f32.xlu0 %v1636
    %v1638 = vpop.xlane.xlu0 %1637
    %v1639 = vsel %vm1623, %v1512, -inf
    %1640 = vmax.xlane.f32.xlu0 %v1639
    %v1641 = vpop.xlane.xlu0 %1640
    %v1642 = vsel %vm1623, %v1548, -inf
    %1643 = vmax.xlane.f32.xlu0 %v1642
    %v1644 = vpop.xlane.xlu0 %1643
    %v1645 = vsel %vm1623, %v1584, -inf
    %1646 = vmax.xlane.f32.xlu0 %v1645
    %v1647 = vpop.xlane.xlu0 %1646
    %v1648 = vsel %vm1623, %v1620, -inf
    %1649 = vmax.xlane.f32.xlu0 %v1648
    %v1650 = vpop.xlane.xlu0 %1649
    %v1651 = vsub.f32 %v1332, %v1626
    %v1652 = vsub.f32 %v1368, %v1629
    %v1653 = vsub.f32 %v1404, %v1632
    %v1654 = vsub.f32 %v1440, %v1635
    %v1655 = vsub.f32 %v1476, %v1638
    %v1656 = vsub.f32 %v1512, %v1641
    %v1657 = vsub.f32 %v1548, %v1644
    %v1658 = vsub.f32 %v1584, %v1647
    %v1659 = vsub.f32 %v1620, %v1650
    %v1660 = vmul.f32 %v1651, 1.442695
    %v1661 = vpow.pop %v1660
    %v1662 = vmul.f32 %v1652, 1.442695
    %v1663 = vpow.pop %v1662
    %v1664 = vmul.f32 %v1653, 1.442695
    %v1665 = vpow.pop %v1664
    %v1666 = vmul.f32 %v1654, 1.442695
    %v1667 = vpow.pop %v1666
    %v1668 = vmul.f32 %v1655, 1.442695
    %v1669 = vpow.pop %v1668
    %v1670 = vmul.f32 %v1656, 1.442695
    %v1671 = vpow.pop %v1670
    %v1672 = vmul.f32 %v1657, 1.442695
    %v1673 = vpow.pop %v1672
    %v1674 = vmul.f32 %v1658, 1.442695
    %v1675 = vpow.pop %v1674
    %v1676 = vmul.f32 %v1659, 1.442695
    %v1677 = vpow.pop %v1676
    %v1678 = vsel %vm1623, %v1661, 0.0
    %1679 = vadd.xlane.f32.xlu0 %v1678
    %v1680 = vpop.xlane.xlu0 %1679
    %v1681 = vsel %vm1623, %v1663, 0.0
    %1682 = vadd.xlane.f32.xlu0 %v1681
    %v1683 = vpop.xlane.xlu0 %1682
    %v1684 = vsel %vm1623, %v1665, 0.0
    %1685 = vadd.xlane.f32.xlu0 %v1684
    %v1686 = vpop.xlane.xlu0 %1685
    %v1687 = vsel %vm1623, %v1667, 0.0
    %1688 = vadd.xlane.f32.xlu0 %v1687
    %v1689 = vpop.xlane.xlu0 %1688
    %v1690 = vsel %vm1623, %v1669, 0.0
    %1691 = vadd.xlane.f32.xlu0 %v1690
    %v1692 = vpop.xlane.xlu0 %1691
    %v1693 = vsel %vm1623, %v1671, 0.0
    %1694 = vadd.xlane.f32.xlu0 %v1693
    %v1695 = vpop.xlane.xlu0 %1694
    %v1696 = vsel %vm1623, %v1673, 0.0
    %1697 = vadd.xlane.f32.xlu0 %v1696
    %v1698 = vpop.xlane.xlu0 %1697
    %v1699 = vsel %vm1623, %v1675, 0.0
    %1700 = vadd.xlane.f32.xlu0 %v1699
    %v1701 = vpop.xlane.xlu0 %1700
    %v1702 = vsel %vm1623, %v1677, 0.0
    %1703 = vadd.xlane.f32.xlu0 %v1702
    %v1704 = vpop.xlane.xlu0 %1703
    %v1705 = vrcp.pop %v1680
    %v1706 = vmul.f32 %v1680, %v1705
    %v1707 = vsub.f32 1.0, %v1706
    %v1708 = vmul.f32 %v1705, %v1707
    %v1709 = vadd.f32 %v1705, %v1708
    %vm1710 = vweird.f32 %v1680
    %vm1711 = vweird.f32 %v1705
    %vm1712 = vmor %vm1710, %vm1711
    %v1713 = vsel %vm1712, %v1705, %v1709
    %v1714 = vand.u32 2147483647, %v1680
    %vm1715 = vcmp.eq.f32.partialorder %v1714, 8.507059e+37
    %v1716 = vand.u32 %v1680, 2147483648
    %v1717 = vor.u32 1.1754944e-38, %v1716
    %v1718 = vsel %vm1715, %v1717, %v1713
    %v1719 = vmul.f32 %v1661, %v1718
    %v1720 = vrcp.pop %v1683
    %v1721 = vmul.f32 %v1683, %v1720
    %v1722 = vsub.f32 1.0, %v1721
    %v1723 = vmul.f32 %v1720, %v1722
    %v1724 = vadd.f32 %v1720, %v1723
    %vm1725 = vweird.f32 %v1683
    %vm1726 = vweird.f32 %v1720
    %vm1727 = vmor %vm1725, %vm1726
    %v1728 = vsel %vm1727, %v1720, %v1724
    %v1729 = vand.u32 2147483647, %v1683
    %vm1730 = vcmp.eq.f32.partialorder %v1729, 8.507059e+37
    %v1731 = vand.u32 %v1683, 2147483648
    %v1732 = vor.u32 1.1754944e-38, %v1731
    %v1733 = vsel %vm1730, %v1732, %v1728
    %v1734 = vmul.f32 %v1663, %v1733
    %v1735 = vrcp.pop %v1686
    %v1736 = vmul.f32 %v1686, %v1735
    %v1737 = vsub.f32 1.0, %v1736
    %v1738 = vmul.f32 %v1735, %v1737
    %v1739 = vadd.f32 %v1735, %v1738
    %vm1740 = vweird.f32 %v1686
    %vm1741 = vweird.f32 %v1735
    %vm1742 = vmor %vm1740, %vm1741
    %v1743 = vsel %vm1742, %v1735, %v1739
    %v1744 = vand.u32 2147483647, %v1686
    %vm1745 = vcmp.eq.f32.partialorder %v1744, 8.507059e+37
    %v1746 = vand.u32 %v1686, 2147483648
    %v1747 = vor.u32 1.1754944e-38, %v1746
    %v1748 = vsel %vm1745, %v1747, %v1743
    %v1749 = vmul.f32 %v1665, %v1748
    %v1750 = vrcp.pop %v1689
    %v1751 = vmul.f32 %v1689, %v1750
    %v1752 = vsub.f32 1.0, %v1751
    %v1753 = vmul.f32 %v1750, %v1752
    %v1754 = vadd.f32 %v1750, %v1753
    %vm1755 = vweird.f32 %v1689
    %vm1756 = vweird.f32 %v1750
    %vm1757 = vmor %vm1755, %vm1756
    %v1758 = vsel %vm1757, %v1750, %v1754
    %v1759 = vand.u32 2147483647, %v1689
    %vm1760 = vcmp.eq.f32.partialorder %v1759, 8.507059e+37
    %v1761 = vand.u32 %v1689, 2147483648
    %v1762 = vor.u32 1.1754944e-38, %v1761
    %v1763 = vsel %vm1760, %v1762, %v1758
    %v1764 = vmul.f32 %v1667, %v1763
    %v1765 = vrcp.pop %v1692
    %v1766 = vmul.f32 %v1692, %v1765
    %v1767 = vsub.f32 1.0, %v1766
    %v1768 = vmul.f32 %v1765, %v1767
    %v1769 = vadd.f32 %v1765, %v1768
    %vm1770 = vweird.f32 %v1692
    %vm1771 = vweird.f32 %v1765
    %vm1772 = vmor %vm1770, %vm1771
    %v1773 = vsel %vm1772, %v1765, %v1769
    %v1774 = vand.u32 2147483647, %v1692
    %vm1775 = vcmp.eq.f32.partialorder %v1774, 8.507059e+37
    %v1776 = vand.u32 %v1692, 2147483648
    %v1777 = vor.u32 1.1754944e-38, %v1776
    %v1778 = vsel %vm1775, %v1777, %v1773
    %v1779 = vmul.f32 %v1669, %v1778
    %v1780 = vrcp.pop %v1695
    %v1781 = vmul.f32 %v1695, %v1780
    %v1782 = vsub.f32 1.0, %v1781
    %v1783 = vmul.f32 %v1780, %v1782
    %v1784 = vadd.f32 %v1780, %v1783
    %vm1785 = vweird.f32 %v1695
    %vm1786 = vweird.f32 %v1780
    %vm1787 = vmor %vm1785, %vm1786
    %v1788 = vsel %vm1787, %v1780, %v1784
    %v1789 = vand.u32 2147483647, %v1695
    %vm1790 = vcmp.eq.f32.partialorder %v1789, 8.507059e+37
    %v1791 = vand.u32 %v1695, 2147483648
    %v1792 = vor.u32 1.1754944e-38, %v1791
    %v1793 = vsel %vm1790, %v1792, %v1788
    %v1794 = vmul.f32 %v1671, %v1793
    %v1795 = vrcp.pop %v1698
    %v1796 = vmul.f32 %v1698, %v1795
    %v1797 = vsub.f32 1.0, %v1796
    %v1798 = vmul.f32 %v1795, %v1797
    %v1799 = vadd.f32 %v1795, %v1798
    %vm1800 = vweird.f32 %v1698
    %vm1801 = vweird.f32 %v1795
    %vm1802 = vmor %vm1800, %vm1801
    %v1803 = vsel %vm1802, %v1795, %v1799
    %v1804 = vand.u32 2147483647, %v1698
    %vm1805 = vcmp.eq.f32.partialorder %v1804, 8.507059e+37
    %v1806 = vand.u32 %v1698, 2147483648
    %v1807 = vor.u32 1.1754944e-38, %v1806
    %v1808 = vsel %vm1805, %v1807, %v1803
    %v1809 = vmul.f32 %v1673, %v1808
    %v1810 = vrcp.pop %v1701
    %v1811 = vmul.f32 %v1701, %v1810
    %v1812 = vsub.f32 1.0, %v1811
    %v1813 = vmul.f32 %v1810, %v1812
    %v1814 = vadd.f32 %v1810, %v1813
    %vm1815 = vweird.f32 %v1701
    %vm1816 = vweird.f32 %v1810
    %vm1817 = vmor %vm1815, %vm1816
    %v1818 = vsel %vm1817, %v1810, %v1814
    %v1819 = vand.u32 2147483647, %v1701
    %vm1820 = vcmp.eq.f32.partialorder %v1819, 8.507059e+37
    %v1821 = vand.u32 %v1701, 2147483648
    %v1822 = vor.u32 1.1754944e-38, %v1821
    %v1823 = vsel %vm1820, %v1822, %v1818
    %v1824 = vmul.f32 %v1675, %v1823
    %v1825 = vrcp.pop %v1704
    %v1826 = vmul.f32 %v1704, %v1825
    %v1827 = vsub.f32 1.0, %v1826
    %v1828 = vmul.f32 %v1825, %v1827
    %v1829 = vadd.f32 %v1825, %v1828
    %vm1830 = vweird.f32 %v1704
    %vm1831 = vweird.f32 %v1825
    %vm1832 = vmor %vm1830, %vm1831
    %v1833 = vsel %vm1832, %v1825, %v1829
    %v1834 = vand.u32 2147483647, %v1704
    %vm1835 = vcmp.eq.f32.partialorder %v1834, 8.507059e+37
    %v1836 = vand.u32 %v1704, 2147483648
    %v1837 = vor.u32 1.1754944e-38, %v1836
    %v1838 = vsel %vm1835, %v1837, %v1833
    %v1839 = vmul.f32 %v1677, %v1838
    %1840 = vst.msk [vmem:[#allocation2] sm:$0xff] %vm1623, %v1719
    %1841 = vst.msk [vmem:[#allocation2 + $0x8] sm:$0xff] %vm1623, %v1734
    %1842 = vst.msk [vmem:[#allocation2 + $0x10] sm:$0xff] %vm1623, %v1749
    %1843 = vst.msk [vmem:[#allocation2 + $0x18] sm:$0xff] %vm1623, %v1764
    %1844 = vst.msk [vmem:[#allocation2 + $0x20] sm:$0xff] %vm1623, %v1779
    %1845 = vst.msk [vmem:[#allocation2 + $0x28] sm:$0xff] %vm1623, %v1794
    %1846 = vst.msk [vmem:[#allocation2 + $0x30] sm:$0xff] %vm1623, %v1809
    %1847 = vst.msk [vmem:[#allocation2 + $0x38] sm:$0xff] %vm1623, %v1824
    %1848 = vst.msk [vmem:[#allocation2 + $0x40] sm:$0xff] %vm1623, %v1839
    // Predicated region
    $region54: #{tpu_custom_call.1} parent=1 // pred_check
      _
    $region55: #{tpu_custom_call.1} parent=1 // pred_check_branch
      %1850 = sbr.rel (0) target = $region57
    $region56: #{tpu_custom_call.1} parent=1 // pred_region
      %1852 = vsyncadd [#allocation3], 0
      %s1853 = sshll.u32 [#allocation2], 4
      %s1854 = int_to_ptr.vmem [resolvable:$true] %s1853
      %s1855 = sshll.u32 %s13, 4
      %s1856 = int_to_ptr.hbm [resolvable:$true] %s1855
      %1861 = dma.vmem_to_hbm [thread:$0]  %s1854, 1152, %s1856, [#allocation3], 128, 128, 8
    $region57: #{tpu_custom_call.1} parent=1 // pred_fallthru
      _
    // Predicated region
    $region58: #{tpu_custom_call.1} parent=1 // pred_check
      _
    $region59: #{tpu_custom_call.1} parent=1 // pred_check_branch
      %1863 = sbr.rel (0) target = $region61
    $region60: #{tpu_custom_call.1} parent=1 // pred_region
      %1865 = dma.done [#allocation3], 1152
    $region61: #{tpu_custom_call.1} parent=1 // pred_fallthru
      _
    %1866 = vsyncpa [#allocation3], 1

</llo_original>
